<compile_context>
chip_gen: v7x
topology: tpu7x:2x2x1
jax: 0.10.0
libtpu: 0.0.40
codegen_flags: <defaults>
</compile_context>

<pallas_src>
import functools

import jax
import jax.numpy as jnp
import numpy as np
from jax.experimental import pallas as pl
from jax.experimental.pallas import tpu as pltpu


def _round_up(x, m):
    return ((x + m - 1) // m) * m


def _softplus(x):
    # numerically stable softplus (matches F.softplus)
    return jnp.maximum(x, 0.0) + jnp.log(1.0 + jnp.exp(-jnp.abs(x)))


def _siglip_kernel(img_ref, key_ref, ztxt_ref, scal_ref,            # inputs
                   zimg_ref, all_ref, sel_ref, final_ref, loss_ref, # outputs
                   min_ref, idx_ref, bestz_ref,                     # scratch
                   *, n_valid):
    eps = jnp.float32(1e-12)
    inf = jnp.float32(jnp.inf)
    step = pl.program_id(0)
    nsteps = pl.num_programs(0)

    t = scal_ref[0, 0]          # exp(log_t), precomputed in the wrapper
    b = scal_ref[0, 1]          # bias

    tile_s = img_ref.shape[0]
    n_pad = ztxt_ref.shape[0]

    # ---------------- init carried accumulators (first row tile) ----------------
    @pl.when(step == 0)
    def _init():
        min_ref[...] = jnp.full_like(min_ref, jnp.inf)
        idx_ref[...] = jnp.zeros_like(idx_ref)
        bestz_ref[...] = jnp.zeros_like(bestz_ref)

    # ---------------- per-tile: normalize image rows + logits tile --------------
    img = img_ref[...]                                            # (tile_s, d_pad) f32
    zimg = img / (jnp.sqrt(jnp.sum(img * img, axis=-1, keepdims=True)) + eps)
    zimg_ref[...] = zimg
    zimg_bf = zimg.astype(jnp.bfloat16)

    ztxt_bf = ztxt_ref[...]                                       # (n_pad, d_pad) bf16
    logits = jax.lax.dot_general(
        zimg_bf, ztxt_bf,
        dimension_numbers=(((1,), (1,)), ((), ())),
        preferred_element_type=jnp.float32) * t + b               # (tile_s, n_pad) f32
    all_ref[...] = logits

    # ---------------- per-text running min / argmin over candidates -------------
    key = key_ref[...]                                            # (tile_s, 1) int32
    col_ids = jax.lax.broadcasted_iota(jnp.int32, (tile_s, n_pad), 1)
    onehot = key == col_ids                                       # (tile_s, n_pad) bool

    tp = jnp.sum(jnp.where(onehot, logits, 0.0), axis=1, keepdims=True)   # (tile_s, 1)
    pot_loss = _softplus(-tp)                                     # (tile_s, 1)
    cand = jnp.where(onehot, pot_loss, inf)                       # (tile_s, n_pad)

    tile_min = jnp.min(cand, axis=0, keepdims=True)               # (1, n_pad)
    row_ids = jax.lax.broadcasted_iota(jnp.int32, (tile_s, n_pad), 0)
    # first occurrence of the per-column min within this tile
    tile_arg = jnp.min(jnp.where(cand == tile_min, row_ids, tile_s),
                       axis=0, keepdims=True)                     # (1, n_pad)

    improved = tile_min < min_ref[...]                            # strict < keeps earliest
    idx_ref[...] = jnp.where(improved, tile_arg + step * tile_s, idx_ref[...])
    min_ref[...] = jnp.where(improved, tile_min, min_ref[...])

    # gather the winning normalized image rows of this tile into bestZ (bf16)
    sel_onehot = ((row_ids == tile_arg) & improved).astype(jnp.bfloat16)  # (tile_s, n_pad)
    new_rows = jax.lax.dot_general(
        sel_onehot, zimg_bf,
        dimension_numbers=(((0,), (0,)), ((), ())),
        preferred_element_type=jnp.float32)                       # (n_pad, d_pad)
    # per-text "improved" indicator in row layout via a tiny matmul
    # (avoids a cross-lane transpose of the (1, n_pad) mask): 0 -> overwrite, 1 -> keep.
    keep_col = 1.0 - jax.lax.dot_general(
        sel_onehot, jnp.ones((tile_s, 1), jnp.bfloat16),
        dimension_numbers=(((0,), (0,)), ((), ())),
        preferred_element_type=jnp.float32)                       # (n_pad, 1)
    bestz_ref[...] = (new_rows + keep_col * bestz_ref[...]).astype(jnp.bfloat16)

    # ---------------- epilogue (last row tile): selection + final loss ----------
    @pl.when(step == nsteps - 1)
    def _epilogue():
        has_cand = min_ref[...] < inf                             # (1, n_pad)
        sel_ref[...] = jnp.where(has_cand, idx_ref[...], jnp.int32(-1))

        # Texts with no candidate (and padded rows) have a zero bestZ row, so
        # their final logits are exactly `b` without any explicit fill.
        final = jax.lax.dot_general(
            bestz_ref[...], ztxt_bf,
            dimension_numbers=(((1,), (1,)), ((), ())),
            preferred_element_type=jnp.float32) * t + b           # (n_pad, n_pad)
        final_ref[...] = final

        ri = jax.lax.broadcasted_iota(jnp.int32, (n_pad, n_pad), 0)
        ci = jax.lax.broadcasted_iota(jnp.int32, (n_pad, n_pad), 1)
        labels = jnp.where(ri == ci, 1.0, -1.0)
        valid = (ri < n_valid) & (ci < n_valid)
        terms = jnp.where(valid, _softplus(-(labels * final)), 0.0)
        loss_ref[...] = (jnp.sum(terms, axis=(0, 1), keepdims=True)
                         * jnp.float32(1.0 / n_valid))


def _pick_vmem_limit(footprint_bytes):
    """Footprint-derived VMEM limit with per-generation headroom (no hard 64 MiB)."""
    try:
        capacity = int(pltpu.get_tpu_info().vmem_capacity_bytes)
    except Exception:  # fall back if the query is unavailable
        capacity = 128 * 1024 * 1024
    cap = min(capacity - (16 << 20), 100 << 20)   # leave room for Mosaic scratch
    want = int(footprint_bytes * 1.25) + (8 << 20)
    return int(max(32 << 20, min(want, cap)))


def siglip_loss_with_ambiguity(img_emb_raw, txt_emb_raw, key,
                               log_t=0.0, bias=0.0, tile_s=None):
    s, d = img_emb_raw.shape
    n, d2 = txt_emb_raw.shape
    if d != d2:
        raise ValueError(f"Image and text embedding dimensions must match ({d} vs {d2}).")

    eps = jnp.float32(1e-12)
    img = img_emb_raw.astype(jnp.float32)
    txt = txt_emb_raw.astype(jnp.float32)
    # Text tower normalized once, outside the kernel (plain XLA); f32 debug
    # output comes straight from here.
    ztxt = txt / (jnp.sqrt(jnp.sum(txt * txt, axis=-1, keepdims=True)) + eps)

    if n == 0:  # degenerate case of the module: loss = 0
        zimg = img / (jnp.sqrt(jnp.sum(img * img, axis=-1, keepdims=True)) + eps)
        return (jnp.float32(0.0), jnp.full((0,), -1, jnp.int32), zimg, ztxt,
                jnp.zeros((s, 0), jnp.float32), jnp.zeros((0, 0), jnp.float32))

    if tile_s is None:
        # MXU-friendly default (multiple of 128) for large batches; small
        # batches use a single tile.
        tile_s = 256 if s > 256 else _round_up(max(s, 1), 16)
    tile_s = max(16, _round_up(tile_s, 16))       # bf16 sublane packing
    s_pad = _round_up(max(s, 1), tile_s)
    n_pad = _round_up(n, 128)                     # lane-dense logits / sel / final
    d_pad = _round_up(d, 128)                     # MXU-aligned contraction dim
    num_tiles = s_pad // tile_s

    img_p = jnp.zeros((s_pad, d_pad), jnp.float32).at[:s, :d].set(img)
    # padded image rows get key = -1 so they can never be candidates
    key_p = jnp.full((s_pad, 1), -1, dtype=jnp.int32).at[:s, 0].set(
        key.astype(jnp.int32))
    ztxt_bf_p = jnp.zeros((n_pad, d_pad), jnp.bfloat16).at[:n, :d].set(
        ztxt.astype(jnp.bfloat16))
    scal = jnp.stack([jnp.exp(jnp.asarray(log_t, jnp.float32)),
                      jnp.asarray(bias, jnp.float32)]).reshape(1, 2)

    out_shapes = (
        jax.ShapeDtypeStruct((s_pad, d_pad), jnp.float32),   # zimg
        jax.ShapeDtypeStruct((s_pad, n_pad), jnp.float32),   # all_pairs_logits
        jax.ShapeDtypeStruct((1, n_pad), jnp.int32),         # selected indices
        jax.ShapeDtypeStruct((n_pad, n_pad), jnp.float32),   # final_logits
        jax.ShapeDtypeStruct((1, 1), jnp.float32),           # loss
    )

    smem = pl.BlockSpec(memory_space=pltpu.MemorySpace.SMEM)
    in_specs = [
        pl.BlockSpec((tile_s, d_pad), lambda i: (i, 0)),     # img  (streamed row tiles)
        pl.BlockSpec((tile_s, 1), lambda i: (i, 0)),         # key  (streamed)
        pl.BlockSpec((n_pad, d_pad), lambda i: (0, 0)),      # ztxt bf16 (resident)
        smem,                                                # [exp(log_t), bias]
    ]
    out_specs = (
        pl.BlockSpec((tile_s, d_pad), lambda i: (i, 0)),     # zimg
        pl.BlockSpec((tile_s, n_pad), lambda i: (i, 0)),     # all_pairs
        pl.BlockSpec((1, n_pad), lambda i: (0, 0)),          # sel
        pl.BlockSpec((n_pad, n_pad), lambda i: (0, 0)),      # final_logits
        pl.BlockSpec((1, 1), lambda i: (0, 0)),              # loss
    )
    scratch_shapes = [
        pltpu.VMEM((1, n_pad), jnp.float32),        # running per-text min candidate loss
        pltpu.VMEM((1, n_pad), jnp.int32),          # running per-text best image index
        pltpu.VMEM((n_pad, d_pad), jnp.bfloat16),   # gathered best normalized image rows
    ]

    # Footprint: double-buffered streamed tiles + resident blocks + scratch.
    streamed = 2 * (tile_s * d_pad * 4 + tile_s * 4
                    + tile_s * d_pad * 4 + tile_s * n_pad * 4)
    resident = 2 * (n_pad * d_pad * 2 + n_pad * 4 + n_pad * n_pad * 4 + 4)
    scratch = n_pad * 8 + n_pad * d_pad * 2
    vmem_limit = _pick_vmem_limit(streamed + resident + scratch)

    kernel = functools.partial(_siglip_kernel, n_valid=n)

    zimg_p, all_p, sel_p, final_p, loss_p = pl.pallas_call(
        kernel,
        grid=(num_tiles,),
        out_shape=out_shapes,
        in_specs=in_specs,
        out_specs=out_specs,
        scratch_shapes=scratch_shapes,
        compiler_params=pltpu.CompilerParams(
            dimension_semantics=("arbitrary",),
            vmem_limit_bytes=vmem_limit),
    )(img_p, key_p, ztxt_bf_p, scal)

    loss = loss_p[0, 0]
    sel = sel_p[0, :n]
    zimg = zimg_p[:s, :d]
    all_pairs = all_p[:s, :n]
    final_logits = final_p[:n, :n]
    return loss, sel, zimg, ztxt, all_pairs, final_logits


# --------------------------- numpy reference (test) ---------------------------

def _bf16_round(x):
    return np.asarray(jnp.asarray(x, jnp.float32).astype(jnp.bfloat16)
                      .astype(jnp.float32))


def _reference(img, txt, key, log_t, bias):
    img = np.asarray(img, np.float32)
    txt = np.asarray(txt, np.float32)
    key = np.asarray(key)
    t = np.exp(np.float32(log_t))
    b = np.float32(bias)
    zimg = img / (np.linalg.norm(img, axis=-1, keepdims=True) + 1e-12)
    ztxt = txt / (np.linalg.norm(txt, axis=-1, keepdims=True) + 1e-12)
    # model the kernel's bf16 MXU inputs (f32 accumulation)
    zimg_q = _bf16_round(zimg)
    ztxt_q = _bf16_round(ztxt)
    all_pairs = zimg_q @ ztxt_q.T * t + b
    s, n = all_pairs.shape
    sp = lambda x: np.maximum(x, 0) + np.log1p(np.exp(-np.abs(x)))
    losses = sp(-all_pairs[np.arange(s), key])
    sel = np.full((n,), -1, np.int32)
    final = np.full((n, n), b, np.float32)       # empty groups -> all-bias row
    for j in range(n):
        cands = np.nonzero(key == j)[0]
        if cands.size == 0:
            continue
        best = cands[np.argmin(losses[cands])]
        sel[j] = best
        final[j] = all_pairs[best]               # == zimg[best] @ ztxt.T * t + b
    labels = 2 * np.eye(n, dtype=np.float32) - 1
    loss = sp(-(labels * final)).sum() / n
    return loss, sel, zimg, ztxt, all_pairs, final


if __name__ == "__main__":
    s, n, d = 40, 20, 96
    key0 = jax.random.PRNGKey(0)
    k1, k2, k3 = jax.random.split(key0, 3)
    img = jax.random.normal(k1, (s, d), dtype=jnp.float32)
    txt = jax.random.normal(k2, (n, d), dtype=jnp.float32)
    key_idx = jax.random.randint(k3, (s,), 0, n, dtype=jnp.int32)

    log_t = 0.3
    bias = -0.2

    r_loss, r_sel, r_zimg, r_ztxt, r_all, r_final = _reference(
        img, txt, key_idx, log_t, bias)

    # tile_s=16 forces a 3-step grid (s padded 40 -> 48), exercising the carried
    # accumulators, padding and the epilogue; tile_s=None tests the default
    # single-tile path.
    for ts in (16, None):
        outs = siglip_loss_with_ambiguity(img, txt, key_idx,
                                          log_t=log_t, bias=bias, tile_s=ts)
        outs = jax.block_until_ready(outs)
        loss, sel, zimg, ztxt, all_pairs, final_logits = outs

        np.testing.assert_allclose(np.asarray(loss), r_loss, rtol=1e-4, atol=1e-4)
        np.testing.assert_array_equal(np.asarray(sel), r_sel)
        np.testing.assert_allclose(np.asarray(zimg), r_zimg, rtol=1e-5, atol=1e-5)
        np.testing.assert_allclose(np.asarray(ztxt), r_ztxt, rtol=1e-5, atol=1e-5)
        np.testing.assert_allclose(np.asarray(all_pairs), r_all, rtol=1e-4, atol=1e-4)
        np.testing.assert_allclose(np.asarray(final_logits), r_final,
                                   rtol=1e-4, atol=1e-4)

    print("KERNEL_OK")
</pallas_src>

<mosaic_0001>
module attributes {stable_mosaic.version = 11 : i64} {
  func.func @_siglip_kernel(%arg0: i32, %arg1: memref<16x128xf32, #tpu.memory_space<vmem>>, %arg2: memref<16x1xi32, #tpu.memory_space<vmem>>, %arg3: memref<128x128xbf16, #tpu.memory_space<vmem>>, %arg4: memref<1x2xf32, #tpu.memory_space<smem>>, %arg5: memref<16x128xf32, #tpu.memory_space<vmem>>, %arg6: memref<16x128xf32, #tpu.memory_space<vmem>>, %arg7: memref<1x128xi32, #tpu.memory_space<vmem>>, %arg8: memref<128x128xf32, #tpu.memory_space<vmem>>, %arg9: memref<1x1xf32, #tpu.memory_space<vmem>>, %arg10: memref<1x128xf32, #tpu.memory_space<vmem>>, %arg11: memref<1x128xi32, #tpu.memory_space<vmem>>, %arg12: memref<128x128xbf16, #tpu.memory_space<vmem>>) attributes {dimension_semantics = [#tpu.dimension_semantics<arbitrary>], iteration_bounds = array<i64: 3>, scalar_prefetch = 0 : i64, scratch_operands = 3 : i64, tpu.core_type = #tpu.core_type<tc>, window_params = [{transform_indices = @transform_0, window_bounds = array<i64: 16, 128>}, {transform_indices = @transform_1, window_bounds = array<i64: 16, 1>}, {pipeline_mode = #tpu.pipeline_mode<synchronous>, transform_indices = @transform_2, window_bounds = array<i64: 128, 128>}, {transform_indices = @transform_3, window_bounds = array<i64: 1, 2>}, {transform_indices = @transform_4, window_bounds = array<i64: 16, 128>}, {transform_indices = @transform_5, window_bounds = array<i64: 16, 128>}, {pipeline_mode = #tpu.pipeline_mode<synchronous>, transform_indices = @transform_6, window_bounds = array<i64: 1, 128>}, {pipeline_mode = #tpu.pipeline_mode<synchronous>, transform_indices = @transform_7, window_bounds = array<i64: 128, 128>}, {pipeline_mode = #tpu.pipeline_mode<synchronous>, transform_indices = @transform_8, window_bounds = array<i64: 1, 1>}]} {
    %c0 = arith.constant 0 : index
    %c0_0 = arith.constant 0 : index
    %0 = memref.load %arg4[%c0, %c0_0] : memref<1x2xf32, #tpu.memory_space<smem>>
    %c0_1 = arith.constant 0 : index
    %c1 = arith.constant 1 : index
    %1 = memref.load %arg4[%c0_1, %c1] : memref<1x2xf32, #tpu.memory_space<smem>>
    %c0_i32 = arith.constant 0 : i32
    %2 = arith.cmpi eq, %arg0, %c0_i32 : i32
    %3 = arith.extui %2 : i1 to i32
    %c0_i32_2 = arith.constant 0 : i32
    %4 = arith.cmpi ne, %3, %c0_i32_2 : i32
    scf.if %4 {
      %cst_45 = arith.constant 0x7F800000 : f32
      %89 = vector.broadcast %cst_45 : f32 to vector<1x128xf32>
      %c0_46 = arith.constant 0 : index
      %c0_47 = arith.constant 0 : index
      %90 = vector.load %arg10[%c0_46, %c0_47] : memref<1x128xf32, #tpu.memory_space<vmem>>, vector<1x128xf32>
      tpu.vector_store %arg10[%c0_46, %c0_47], %89 {strides = array<i32>} : memref<1x128xf32, #tpu.memory_space<vmem>>, vector<1x128xf32>,
      %c0_i32_48 = arith.constant 0 : i32
      %91 = vector.broadcast %c0_i32_48 : i32 to vector<1x128xi32>
      %c0_49 = arith.constant 0 : index
      %c0_50 = arith.constant 0 : index
      %92 = vector.load %arg11[%c0_49, %c0_50] : memref<1x128xi32, #tpu.memory_space<vmem>>, vector<1x128xi32>
      tpu.vector_store %arg11[%c0_49, %c0_50], %91 {strides = array<i32>} : memref<1x128xi32, #tpu.memory_space<vmem>>, vector<1x128xi32>,
      %cst_51 = arith.constant 0.000000e+00 : bf16
      %93 = vector.broadcast %cst_51 : bf16 to vector<128x128xbf16>
      %c0_52 = arith.constant 0 : index
      %c0_53 = arith.constant 0 : index
      %94 = vector.load %arg12[%c0_52, %c0_53] : memref<128x128xbf16, #tpu.memory_space<vmem>>, vector<128x128xbf16>
      tpu.vector_store %arg12[%c0_52, %c0_53], %93 {strides = array<i32>} : memref<128x128xbf16, #tpu.memory_space<vmem>>, vector<128x128xbf16>,
    } else {
    }
    %c0_3 = arith.constant 0 : index
    %c0_4 = arith.constant 0 : index
    %5 = vector.load %arg1[%c0_3, %c0_4] : memref<16x128xf32, #tpu.memory_space<vmem>>, vector<16x128xf32>
    %6 = arith.mulf %5, %5 : vector<16x128xf32>
    %cst = arith.constant dense<0.000000e+00> : vector<16xf32>
    %7 = vector.multi_reduction <add>, %6, %cst [1] : vector<16x128xf32> to vector<16xf32>
    %8 = vector.shape_cast %7 : vector<16xf32> to vector<16x1xf32>
    %9 = math.sqrt %8 : vector<16x1xf32>
    %cst_5 = arith.constant 9.99999996E-13 : f32
    %10 = vector.broadcast %cst_5 : f32 to vector<16x1xf32>
    %11 = arith.addf %9, %10 : vector<16x1xf32>
    %12 = vector.broadcast %11 : vector<16x1xf32> to vector<16x128xf32>
    %13 = arith.divf %5, %12 : vector<16x128xf32>
    %c0_6 = arith.constant 0 : index
    %c0_7 = arith.constant 0 : index
    %14 = vector.load %arg5[%c0_6, %c0_7] : memref<16x128xf32, #tpu.memory_space<vmem>>, vector<16x128xf32>
    tpu.vector_store %arg5[%c0_6, %c0_7], %13 {strides = array<i32>} : memref<16x128xf32, #tpu.memory_space<vmem>>, vector<16x128xf32>,
    %15 = arith.truncf %13 : vector<16x128xf32> to vector<16x128xbf16>
    %c0_8 = arith.constant 0 : index
    %c0_9 = arith.constant 0 : index
    %16 = vector.load %arg3[%c0_8, %c0_9] : memref<128x128xbf16, #tpu.memory_space<vmem>>, vector<128x128xbf16>
    %cst_10 = arith.constant dense<0.000000e+00> : vector<16x128xf32>
    %17 = tpu.matmul %15, %16, %cst_10 {dimension_numbers = #tpu.dot_dimension_numbers<[1], [1], [0], [0], [0, 0, 1, 0], [], []>} : vector<16x128xbf16>, vector<128x128xbf16>, vector<16x128xf32> -> vector<16x128xf32>
    %18 = vector.broadcast %0 : f32 to vector<16x128xf32>
    %19 = arith.mulf %17, %18 : vector<16x128xf32>
    %20 = vector.broadcast %1 : f32 to vector<16x128xf32>
    %21 = arith.addf %19, %20 : vector<16x128xf32>
    %c0_11 = arith.constant 0 : index
    %c0_12 = arith.constant 0 : index
    %22 = vector.load %arg6[%c0_11, %c0_12] : memref<16x128xf32, #tpu.memory_space<vmem>>, vector<16x128xf32>
    tpu.vector_store %arg6[%c0_11, %c0_12], %21 {strides = array<i32>} : memref<16x128xf32, #tpu.memory_space<vmem>>, vector<16x128xf32>,
    %c0_13 = arith.constant 0 : index
    %c0_14 = arith.constant 0 : index
    %23 = vector.load %arg2[%c0_13, %c0_14] : memref<16x1xi32, #tpu.memory_space<vmem>>, vector<16x1xi32>
    %24 = tpu.iota {dimensions = array<i32: 1>} : vector<16x128xi32>
    %25 = vector.broadcast %23 : vector<16x1xi32> to vector<16x128xi32>
    %26 = arith.cmpi eq, %25, %24 : vector<16x128xi32>
    %cst_15 = arith.constant 0.000000e+00 : f32
    %27 = vector.broadcast %cst_15 : f32 to vector<16x128xf32>
    %28 = arith.select %26, %21, %27 : vector<16x128xi1>, vector<16x128xf32>
    %cst_16 = arith.constant dense<0.000000e+00> : vector<16xf32>
    %29 = vector.multi_reduction <add>, %28, %cst_16 [1] : vector<16x128xf32> to vector<16xf32>
    %30 = vector.shape_cast %29 : vector<16xf32> to vector<16x1xf32>
    %cst_17 = arith.constant 0.000000e+00 : f32
    %31 = vector.broadcast %cst_17 : f32 to vector<16x1xf32>
    %32 = arith.subf %31, %30 : vector<16x1xf32>
    %cst_18 = arith.constant 0.000000e+00 : f32
    %33 = vector.broadcast %cst_18 : f32 to vector<16x1xf32>
    %34 = arith.maximumf %32, %33 : vector<16x1xf32>
    %35 = math.absf %32 : vector<16x1xf32>
    %cst_19 = arith.constant 0.000000e+00 : f32
    %36 = vector.broadcast %cst_19 : f32 to vector<16x1xf32>
    %37 = arith.subf %36, %35 : vector<16x1xf32>
    %38 = math.exp %37 : vector<16x1xf32>
    %cst_20 = arith.constant 1.000000e+00 : f32
    %39 = vector.broadcast %cst_20 : f32 to vector<16x1xf32>
    %40 = arith.addf %39, %38 : vector<16x1xf32>
    %41 = math.log %40 : vector<16x1xf32>
    %42 = arith.addf %34, %41 : vector<16x1xf32>
    %cst_21 = arith.constant 0x7F800000 : f32
    %43 = vector.shape_cast %42 : vector<16x1xf32> to vector<16x1xf32>
    %44 = vector.broadcast %43 : vector<16x1xf32> to vector<16x128xf32>
    %45 = vector.broadcast %cst_21 : f32 to vector<16x128xf32>
    %46 = arith.select %26, %44, %45 : vector<16x128xi1>, vector<16x128xf32>
    %cst_22 = arith.constant dense<0x7F800000> : vector<128xf32>
    %47 = vector.multi_reduction <minimumf>, %46, %cst_22 [0] : vector<16x128xf32> to vector<128xf32>
    %48 = vector.shape_cast %47 : vector<128xf32> to vector<1x128xf32>
    %49 = tpu.iota {dimensions = array<i32: 0>} : vector<16x128xi32>
    %50 = vector.broadcast %48 : vector<1x128xf32> to vector<16x128xf32>
    %51 = arith.cmpf oeq, %46, %50 : vector<16x128xf32>
    %c16_i32 = arith.constant 16 : i32
    %52 = vector.broadcast %c16_i32 : i32 to vector<16x128xi32>
    %53 = arith.select %51, %49, %52 : vector<16x128xi1>, vector<16x128xi32>
    %cst_23 = arith.constant dense<2147483647> : vector<128xi32>
    %54 = vector.multi_reduction <minsi>, %53, %cst_23 [0] : vector<16x128xi32> to vector<128xi32>
    %55 = vector.shape_cast %54 : vector<128xi32> to vector<1x128xi32>
    %c0_24 = arith.constant 0 : index
    %c0_25 = arith.constant 0 : index
    %56 = vector.load %arg10[%c0_24, %c0_25] : memref<1x128xf32, #tpu.memory_space<vmem>>, vector<1x128xf32>
    %57 = arith.cmpf olt, %48, %56 : vector<1x128xf32>
    %c16_i32_26 = arith.constant 16 : i32
    %58 = arith.muli %arg0, %c16_i32_26 : i32
    %59 = vector.broadcast %58 : i32 to vector<1x128xi32>
    %60 = arith.addi %55, %59 : vector<1x128xi32>
    %c0_27 = arith.constant 0 : index
    %c0_28 = arith.constant 0 : index
    %61 = vector.load %arg11[%c0_27, %c0_28] : memref<1x128xi32, #tpu.memory_space<vmem>>, vector<1x128xi32>
    %62 = arith.select %57, %60, %61 : vector<1x128xi1>, vector<1x128xi32>
    %c0_29 = arith.constant 0 : index
    %c0_30 = arith.constant 0 : index
    %63 = vector.load %arg11[%c0_29, %c0_30] : memref<1x128xi32, #tpu.memory_space<vmem>>, vector<1x128xi32>
    tpu.vector_store %arg11[%c0_29, %c0_30], %62 {strides = array<i32>} : memref<1x128xi32, #tpu.memory_space<vmem>>, vector<1x128xi32>,
    %c0_31 = arith.constant 0 : index
    %c0_32 = arith.constant 0 : index
    %64 = vector.load %arg10[%c0_31, %c0_32] : memref<1x128xf32, #tpu.memory_space<vmem>>, vector<1x128xf32>
    %65 = arith.select %57, %48, %64 : vector<1x128xi1>, vector<1x128xf32>
    %c0_33 = arith.constant 0 : index
    %c0_34 = arith.constant 0 : index
    %66 = vector.load %arg10[%c0_33, %c0_34] : memref<1x128xf32, #tpu.memory_space<vmem>>, vector<1x128xf32>
    tpu.vector_store %arg10[%c0_33, %c0_34], %65 {strides = array<i32>} : memref<1x128xf32, #tpu.memory_space<vmem>>, vector<1x128xf32>,
    %67 = vector.broadcast %55 : vector<1x128xi32> to vector<16x128xi32>
    %68 = arith.cmpi eq, %49, %67 : vector<16x128xi32>
    %69 = vector.broadcast %57 : vector<1x128xi1> to vector<16x128xi1>
    %70 = arith.andi %68, %69 : vector<16x128xi1>
    %71 = arith.extui %70 : vector<16x128xi1> to vector<16x128xi32>
    %72 = arith.sitofp %71 : vector<16x128xi32> to vector<16x128xf32>
    %73 = arith.truncf %72 : vector<16x128xf32> to vector<16x128xbf16>
    %cst_35 = arith.constant dense<0.000000e+00> : vector<128x128xf32>
    %74 = tpu.matmul %73, %15, %cst_35 {dimension_numbers = #tpu.dot_dimension_numbers<[0], [0], [1], [1], [0, 1, 1, 1], [], []>} : vector<16x128xbf16>, vector<16x128xbf16>, vector<128x128xf32> -> vector<128x128xf32>
    %cst_36 = arith.constant 1.000000e+00 : bf16
    %75 = vector.broadcast %cst_36 : bf16 to vector<16x1xbf16>
    %cst_37 = arith.constant dense<0.000000e+00> : vector<128x1xf32>
    %76 = tpu.matmul %73, %75, %cst_37 {dimension_numbers = #tpu.dot_dimension_numbers<[0], [0], [1], [1], [0, 1, 1, 1], [], []>} : vector<16x128xbf16>, vector<16x1xbf16>, vector<128x1xf32> -> vector<128x1xf32>
    %cst_38 = arith.constant 1.000000e+00 : f32
    %77 = vector.broadcast %cst_38 : f32 to vector<128x1xf32>
    %78 = arith.subf %77, %76 : vector<128x1xf32>
    %c0_39 = arith.constant 0 : index
    %c0_40 = arith.constant 0 : index
    %79 = vector.load %arg12[%c0_39, %c0_40] : memref<128x128xbf16, #tpu.memory_space<vmem>>, vector<128x128xbf16>
    %80 = arith.extf %79 : vector<128x128xbf16> to vector<128x128xf32>
    %81 = vector.broadcast %78 : vector<128x1xf32> to vector<128x128xf32>
    %82 = arith.mulf %81, %80 : vector<128x128xf32>
    %83 = arith.addf %74, %82 : vector<128x128xf32>
    %84 = arith.truncf %83 : vector<128x128xf32> to vector<128x128xbf16>
    %c0_41 = arith.constant 0 : index
    %c0_42 = arith.constant 0 : index
    %85 = vector.load %arg12[%c0_41, %c0_42] : memref<128x128xbf16, #tpu.memory_space<vmem>>, vector<128x128xbf16>
    tpu.vector_store %arg12[%c0_41, %c0_42], %84 {strides = array<i32>} : memref<128x128xbf16, #tpu.memory_space<vmem>>, vector<128x128xbf16>,
    %c2_i32 = arith.constant 2 : i32
    %86 = arith.cmpi eq, %arg0, %c2_i32 : i32
    %87 = arith.extui %86 : i1 to i32
    %cst_43 = arith.constant 0x7F800000 : f32
    %c0_i32_44 = arith.constant 0 : i32
    %88 = arith.cmpi ne, %87, %c0_i32_44 : i32
    scf.if %88 {
      %c0_45 = arith.constant 0 : index
      %c0_46 = arith.constant 0 : index
      %89 = vector.load %arg10[%c0_45, %c0_46] : memref<1x128xf32, #tpu.memory_space<vmem>>, vector<1x128xf32>
      %90 = vector.broadcast %cst_43 : f32 to vector<1x128xf32>
      %91 = arith.cmpf olt, %89, %90 : vector<1x128xf32>
      %c0_47 = arith.constant 0 : index
      %c0_48 = arith.constant 0 : index
      %92 = vector.load %arg11[%c0_47, %c0_48] : memref<1x128xi32, #tpu.memory_space<vmem>>, vector<1x128xi32>
      %c-1_i32 = arith.constant -1 : i32
      %93 = vector.broadcast %c-1_i32 : i32 to vector<1x128xi32>
      %94 = arith.select %91, %92, %93 : vector<1x128xi1>, vector<1x128xi32>
      %c0_49 = arith.constant 0 : index
      %c0_50 = arith.constant 0 : index
      %95 = vector.load %arg7[%c0_49, %c0_50] : memref<1x128xi32, #tpu.memory_space<vmem>>, vector<1x128xi32>
      tpu.vector_store %arg7[%c0_49, %c0_50], %94 {strides = array<i32>} : memref<1x128xi32, #tpu.memory_space<vmem>>, vector<1x128xi32>,
      %c0_51 = arith.constant 0 : index
      %c0_52 = arith.constant 0 : index
      %96 = vector.load %arg12[%c0_51, %c0_52] : memref<128x128xbf16, #tpu.memory_space<vmem>>, vector<128x128xbf16>
      %cst_53 = arith.constant dense<0.000000e+00> : vector<128x128xf32>
      %97 = tpu.matmul %96, %16, %cst_53 {dimension_numbers = #tpu.dot_dimension_numbers<[1], [1], [0], [0], [0, 0, 1, 0], [], []>} : vector<128x128xbf16>, vector<128x128xbf16>, vector<128x128xf32> -> vector<128x128xf32>
      %98 = vector.broadcast %0 : f32 to vector<128x128xf32>
      %99 = arith.mulf %97, %98 : vector<128x128xf32>
      %100 = vector.broadcast %1 : f32 to vector<128x128xf32>
      %101 = arith.addf %99, %100 : vector<128x128xf32>
      %c0_54 = arith.constant 0 : index
      %c0_55 = arith.constant 0 : index
      %102 = vector.load %arg8[%c0_54, %c0_55] : memref<128x128xf32, #tpu.memory_space<vmem>>, vector<128x128xf32>
      tpu.vector_store %arg8[%c0_54, %c0_55], %101 {strides = array<i32>} : memref<128x128xf32, #tpu.memory_space<vmem>>, vector<128x128xf32>,
      %103 = tpu.iota {dimensions = array<i32: 0>} : vector<128x128xi32>
      %104 = tpu.iota {dimensions = array<i32: 1>} : vector<128x128xi32>
      %105 = arith.cmpi eq, %103, %104 : vector<128x128xi32>
      %cst_56 = arith.constant 1.000000e+00 : f32
      %cst_57 = arith.constant -1.000000e+00 : f32
      %106 = vector.broadcast %cst_56 : f32 to vector<128x128xf32>
      %107 = vector.broadcast %cst_57 : f32 to vector<128x128xf32>
      %108 = arith.select %105, %106, %107 : vector<128x128xi1>, vector<128x128xf32>
      %c20_i32 = arith.constant 20 : i32
      %109 = vector.broadcast %c20_i32 : i32 to vector<128x128xi32>
      %110 = arith.cmpi slt, %103, %109 : vector<128x128xi32>
      %c20_i32_58 = arith.constant 20 : i32
      %111 = vector.broadcast %c20_i32_58 : i32 to vector<128x128xi32>
      %112 = arith.cmpi slt, %104, %111 : vector<128x128xi32>
      %113 = arith.andi %110, %112 : vector<128x128xi1>
      %114 = arith.mulf %108, %101 : vector<128x128xf32>
      %cst_59 = arith.constant 0.000000e+00 : f32
      %115 = vector.broadcast %cst_59 : f32 to vector<128x128xf32>
      %116 = arith.subf %115, %114 : vector<128x128xf32>
      %cst_60 = arith.constant 0.000000e+00 : f32
      %117 = vector.broadcast %cst_60 : f32 to vector<128x128xf32>
      %118 = arith.maximumf %116, %117 : vector<128x128xf32>
      %119 = math.absf %116 : vector<128x128xf32>
      %cst_61 = arith.constant 0.000000e+00 : f32
      %120 = vector.broadcast %cst_61 : f32 to vector<128x128xf32>
      %121 = arith.subf %120, %119 : vector<128x128xf32>
      %122 = math.exp %121 : vector<128x128xf32>
      %cst_62 = arith.constant 1.000000e+00 : f32
      %123 = vector.broadcast %cst_62 : f32 to vector<128x128xf32>
      %124 = arith.addf %123, %122 : vector<128x128xf32>
      %125 = math.log %124 : vector<128x128xf32>
      %126 = arith.addf %118, %125 : vector<128x128xf32>
      %cst_63 = arith.constant 0.000000e+00 : f32
      %127 = vector.broadcast %cst_63 : f32 to vector<128x128xf32>
      %128 = arith.select %113, %126, %127 : vector<128x128xi1>, vector<128x128xf32>
      %129 = vector.shape_cast %128 : vector<128x128xf32> to vector<1x128x128xf32>
      %cst_64 = arith.constant dense<0.000000e+00> : vector<1xf32>
      %130 = vector.multi_reduction <add>, %129, %cst_64 [1, 2] : vector<1x128x128xf32> to vector<1xf32>
      %131 = vector.shape_cast %130 : vector<1xf32> to vector<1x1x1xf32>
      %132 = vector.extract %131[0, 0, 0] : f32 from vector<1x1x1xf32>
      %133 = vector.broadcast %132 : f32 to vector<1x1xf32>
      %cst_65 = arith.constant 5.000000e-02 : f32
      %134 = vector.broadcast %cst_65 : f32 to vector<1x1xf32>
      %135 = arith.mulf %133, %134 : vector<1x1xf32>
      %c0_66 = arith.constant 0 : index
      %c0_67 = arith.constant 0 : index
      %136 = vector.load %arg9[%c0_66, %c0_67] : memref<1x1xf32, #tpu.memory_space<vmem>>, vector<1x1xf32>
      tpu.vector_store %arg9[%c0_66, %c0_67], %135 {strides = array<i32>} : memref<1x1xf32, #tpu.memory_space<vmem>>, vector<1x1xf32>,
    } else {
    }
    return
  }
  func.func @transform_0(%arg0: i32) -> (i32, i32) {
    %c0_i32 = arith.constant 0 : i32
    %c0_i32_0 = arith.constant 0 : i32
    return %arg0, %c0_i32 : i32, i32
  }
  func.func @transform_1(%arg0: i32) -> (i32, i32) {
    %c0_i32 = arith.constant 0 : i32
    %c0_i32_0 = arith.constant 0 : i32
    return %arg0, %c0_i32 : i32, i32
  }
  func.func @transform_2(%arg0: i32) -> (i32, i32) {
    %c0_i32 = arith.constant 0 : i32
    %c0_i32_0 = arith.constant 0 : i32
    %c0_i32_1 = arith.constant 0 : i32
    return %c0_i32, %c0_i32_0 : i32, i32
  }
  func.func @transform_3(%arg0: i32) -> (i32, i32) {
    %c0_i32 = arith.constant 0 : i32
    %c0_i32_0 = arith.constant 0 : i32
    %c0_i32_1 = arith.constant 0 : i32
    return %c0_i32, %c0_i32_0 : i32, i32
  }
  func.func @transform_4(%arg0: i32) -> (i32, i32) {
    %c0_i32 = arith.constant 0 : i32
    %c0_i32_0 = arith.constant 0 : i32
    return %arg0, %c0_i32 : i32, i32
  }
  func.func @transform_5(%arg0: i32) -> (i32, i32) {
    %c0_i32 = arith.constant 0 : i32
    %c0_i32_0 = arith.constant 0 : i32
    return %arg0, %c0_i32 : i32, i32
  }
  func.func @transform_6(%arg0: i32) -> (i32, i32) {
    %c0_i32 = arith.constant 0 : i32
    %c0_i32_0 = arith.constant 0 : i32
    %c0_i32_1 = arith.constant 0 : i32
    return %c0_i32, %c0_i32_0 : i32, i32
  }
  func.func @transform_7(%arg0: i32) -> (i32, i32) {
    %c0_i32 = arith.constant 0 : i32
    %c0_i32_0 = arith.constant 0 : i32
    %c0_i32_1 = arith.constant 0 : i32
    return %c0_i32, %c0_i32_0 : i32, i32
  }
  func.func @transform_8(%arg0: i32) -> (i32, i32) {
    %c0_i32 = arith.constant 0 : i32
    %c0_i32_0 = arith.constant 0 : i32
    %c0_i32_1 = arith.constant 0 : i32
    return %c0_i32, %c0_i32_0 : i32, i32
  }
}

</mosaic_0001>

<llo_original>
// kernel: tpu_custom_call.1
$region0: #{tpu_custom_call.1}
  #allocation0 [shape = 'u32[]', space=smem, size = 0x4, offset = 0x4, fixed_abs, tag = 'smem constant byte address 0x4 - core index']
  #allocation1 [shape = 'u32[144,128]{1,0:T(1,128)}', space=vmem, size = 0x12000, scoped, tag = 'internal scratch']
  #allocation2 [shape = 'f32[1,128]{1,0:T(1,128)}', space=vmem, size = 0x200, scoped, tag = 'scratch operand']
  #allocation3 [shape = 's32[1,128]{1,0:T(1,128)}', space=vmem, size = 0x200, scoped, tag = 'scratch operand']
  #allocation4 [shape = 'bf16[128,128]{1,0:T(16,128)(2,1)}', space=vmem, size = 0x8000, scoped, tag = 'scratch operand']
  %s0 = inlined_call_operand.vmem [shape: f32[48,128], index: 0, kind: input, shape index: {}]
  %s1 = inlined_call_operand.vmem [shape: s32[48,1], index: 1, kind: input, shape index: {}]
  %s2 = inlined_call_operand.hbm [shape: bf16[128,128], index: 2, kind: input, shape index: {}]
  %s3 = inlined_call_operand.vmem [shape: f32[1,2], index: 3, kind: input, shape index: {}]
  %s4 = inlined_call_operand.hbm [shape: f32[48,128], index: 4, kind: output, shape index: {0}]
  %s5 = inlined_call_operand.hbm [shape: f32[48,128], index: 5, kind: output, shape index: {1}]
  %s6 = inlined_call_operand.hbm [shape: s32[1,128], index: 6, kind: output, shape index: {2}]
  %s7 = inlined_call_operand.hbm [shape: f32[128,128], index: 7, kind: output, shape index: {3}]
  %s8 = inlined_call_operand.hbm [shape: f32[1,1], index: 8, kind: output, shape index: {4}]
  %9 = xla_tuple %s4, %s5, %s6, %s7, %s8
  %s10 = sld [smem:[#allocation0]]
  $region97: #{tpu_custom_call.1} parent=0
    _
  %s12 = ssub.s32 1, %s10
  %s13 = scalar_select 0, %s12, %s10
  $region1: #{tpu_custom_call.1} parent=0
    #allocation5 [shape = 'u8[32768]{0}', space=vmem, size = 0x8000, scoped, tag = 'input window, operand 2, single buffered']
    #allocation6 [shape = 's32[2]{0}', space=sflag, size = 0x8, scoped, tag = 'scoped memory for tpu_custom_call.1']
    #allocation7 [shape = 's32[2]{0}', space=sflag, size = 0x8, scoped, tag = 'scoped memory for tpu_custom_call.1']
    #allocation8 [shape = 's32[2]{0}', space=sflag, size = 0x8, scoped, tag = 'scoped memory for tpu_custom_call.1']
    #allocation9 [shape = 'u8[512]{0}', space=smem, size = 0x200, scoped, tag = 'input window, operand 3, single buffered']
    #allocation10 [shape = 'u8[16384]{0}', space=vmem, size = 0x4000, scoped, tag = 'output window, operand 0']
    #allocation11 [shape = 'u8[16384]{0}', space=vmem, size = 0x4000, scoped, tag = 'output window, operand 1']
    #allocation12 [shape = 's32[2]{0}', space=sflag, size = 0x8, scoped, tag = 'scoped memory for tpu_custom_call.1']
    #allocation13 [shape = 'u8[512]{0}', space=vmem, size = 0x400, scoped, tag = 'output window, operand 2, single buffered']
    #allocation14 [shape = 'u8[65536]{0}', space=vmem, size = 0x10000, scoped, tag = 'output window, operand 3, single buffered']
    #allocation15 [shape = 's32[1]{0}', space=sflag, size = 0x4, scoped, tag = 'scoped memory for tpu_custom_call.1']
    #allocation16 [shape = 'u8[512]{0}', space=vmem, size = 0x400, scoped, tag = 'output window, operand 4, single buffered']
    %14 = vsyncpa [#allocation6], 0
    %15 = vsyncpa [#allocation8], 0
    %16 = vsyncpa [#allocation7], 0
    %s17 = scalar_lea.sflag [#allocation7], 1
    %18 = vsyncpa %s17, 0
    %19 = vsyncpa [#allocation12], 0
    %s20 = scalar_lea.sflag [#allocation12], 1
    %21 = vsyncpa %s20, 0
    %22 = vsyncpa [#allocation15], 0
    loop: start=0, step=1, limit=5
    $region2: #{tpu_custom_call.1} parent=1 // loop_pre_header
      _
    $region3: #{tpu_custom_call.1} parent=1 // loop_header
      %s24 = sphi 0, %s28
      %p25 = scmp.ge.s32.totalorder %s24, 5
      %s34 = sphi 0, %s36
      %s37 = sphi 0, %s34
      %s38 = sphi 0, %s37
      %s54 = sphi 0, %s38
      %s60 = sphi 0, %s62
      %s63 = sphi 0, %s60
      %s64 = sphi 0, %s63
      %s80 = sphi 0, %s64
      %s84 = sphi 0, %s84
      %s86 = sphi 0, %s84
      %s87 = sphi 0, %s86
      %s101 = sphi 0, %s87
      %s105 = sphi 0, %s105
      %s107 = sphi 0, %s105
      %s108 = sphi 0, %s107
      %s122 = sphi 0, %s108
      %s128 = sphi 0, %s130
      %s131 = sphi 0, %s128
      %s132 = sphi 0, %s131
      %s148 = sphi 0, %s132
      %s154 = sphi 0, %s156
      %s157 = sphi 0, %s154
      %s158 = sphi 0, %s157
      %s174 = sphi 0, %s158
      %s178 = sphi 0, %s178
      %s180 = sphi 0, %s178
      %s181 = sphi 0, %s180
      %s195 = sphi 0, %s181
      %s199 = sphi 0, %s199
      %s201 = sphi 0, %s199
      %s202 = sphi 0, %s201
      %s216 = sphi 0, %s202
      %s220 = sphi 0, %s220
      %s222 = sphi 0, %s220
      %s223 = sphi 0, %s222
      %s237 = sphi 0, %s223
    $region4: #{tpu_custom_call.1} parent=1 // loop_header_branch
      %27 = sbr.rel (%p25) target = $region8
    $region5: #{tpu_custom_call.1} parent=1 // loop_body
      %s29 = ssub.s32 %s24, 1
      %s30 = ssub.s32 %s24, 2
      %s31 = sadd.s32 %s24, 1
      %s32 = ssub.s32 %s24, %s31
      %p33 = scmp.eq.s32.totalorder %s32, 0
      %s35 = sadd.s32 %s34, 1
      %s36 = scalar_select %p33, %s34, %s35
      %p39 = pneg %p33
      %p40 = scmp.eq.s32.totalorder %s24, 2
      %p41 = por %p39, %p40
      %p42 = scmp.ne.s32.totalorder %s34, %s37
      %p43 = scmp.eq.s32.totalorder %s24, 0
      %p44 = por %p42, %p43
      %p45 = scmp.ne.s32.totalorder %s34, %s37
      %p46 = scmp.eq.s32.totalorder %s29, 2
      %p47 = por %p45, %p46
      %p48 = scmp.ne.s32.totalorder %s37, %s38
      %p49 = scmp.eq.s32.totalorder %s29, 0
      %p50 = por %p48, %p49
      %p51 = scmp.ne.s32.totalorder %s37, %s38
      %p52 = scmp.eq.s32.totalorder %s30, 2
      %p53 = por %p51, %p52
      %p55 = scmp.ne.s32.totalorder %s38, %s54
      %p56 = scmp.eq.s32.totalorder %s30, 0
      %p57 = por %p55, %p56
      %s58 = ssub.s32 %s24, %s31
      %p59 = scmp.eq.s32.totalorder %s58, 0
      %s61 = sadd.s32 %s60, 1
      %s62 = scalar_select %p59, %s60, %s61
      %p65 = pneg %p59
      %p66 = scmp.eq.s32.totalorder %s24, 2
      %p67 = por %p65, %p66
      %p68 = scmp.ne.s32.totalorder %s60, %s63
      %p69 = scmp.eq.s32.totalorder %s24, 0
      %p70 = por %p68, %p69
      %p71 = scmp.ne.s32.totalorder %s60, %s63
      %p72 = scmp.eq.s32.totalorder %s29, 2
      %p73 = por %p71, %p72
      %p74 = scmp.ne.s32.totalorder %s63, %s64
      %p75 = scmp.eq.s32.totalorder %s29, 0
      %p76 = por %p74, %p75
      %p77 = scmp.ne.s32.totalorder %s63, %s64
      %p78 = scmp.eq.s32.totalorder %s30, 2
      %p79 = por %p77, %p78
      %p81 = scmp.ne.s32.totalorder %s64, %s80
      %p82 = scmp.eq.s32.totalorder %s30, 0
      %p83 = por %p81, %p82
      %s85 = sadd.s32 %s84, 1
      %p88 = scmp.eq.s32.totalorder %s24, 2
      %p89 = scmp.ne.s32.totalorder %s84, %s86
      %p90 = scmp.eq.s32.totalorder %s24, 0
      %p91 = por %p89, %p90
      %p92 = scmp.ne.s32.totalorder %s84, %s86
      %p93 = scmp.eq.s32.totalorder %s29, 2
      %p94 = por %p92, %p93
      %p95 = scmp.ne.s32.totalorder %s86, %s87
      %p96 = scmp.eq.s32.totalorder %s29, 0
      %p97 = por %p95, %p96
      %p98 = scmp.ne.s32.totalorder %s86, %s87
      %p99 = scmp.eq.s32.totalorder %s30, 2
      %p100 = por %p98, %p99
      %p102 = scmp.ne.s32.totalorder %s87, %s101
      %p103 = scmp.eq.s32.totalorder %s30, 0
      %p104 = por %p102, %p103
      %s106 = sadd.s32 %s105, 1
      %p109 = scmp.eq.s32.totalorder %s24, 2
      %p110 = scmp.ne.s32.totalorder %s105, %s107
      %p111 = scmp.eq.s32.totalorder %s24, 0
      %p112 = por %p110, %p111
      %p113 = scmp.ne.s32.totalorder %s105, %s107
      %p114 = scmp.eq.s32.totalorder %s29, 2
      %p115 = por %p113, %p114
      %p116 = scmp.ne.s32.totalorder %s107, %s108
      %p117 = scmp.eq.s32.totalorder %s29, 0
      %p118 = por %p116, %p117
      %p119 = scmp.ne.s32.totalorder %s107, %s108
      %p120 = scmp.eq.s32.totalorder %s30, 2
      %p121 = por %p119, %p120
      %p123 = scmp.ne.s32.totalorder %s108, %s122
      %p124 = scmp.eq.s32.totalorder %s30, 0
      %p125 = por %p123, %p124
      %s126 = ssub.s32 %s24, %s31
      %p127 = scmp.eq.s32.totalorder %s126, 0
      %s129 = sadd.s32 %s128, 1
      %s130 = scalar_select %p127, %s128, %s129
      %p133 = pneg %p127
      %p134 = scmp.eq.s32.totalorder %s24, 2
      %p135 = por %p133, %p134
      %p136 = scmp.ne.s32.totalorder %s128, %s131
      %p137 = scmp.eq.s32.totalorder %s24, 0
      %p138 = por %p136, %p137
      %p139 = scmp.ne.s32.totalorder %s128, %s131
      %p140 = scmp.eq.s32.totalorder %s29, 2
      %p141 = por %p139, %p140
      %p142 = scmp.ne.s32.totalorder %s131, %s132
      %p143 = scmp.eq.s32.totalorder %s29, 0
      %p144 = por %p142, %p143
      %p145 = scmp.ne.s32.totalorder %s131, %s132
      %p146 = scmp.eq.s32.totalorder %s30, 2
      %p147 = por %p145, %p146
      %p149 = scmp.ne.s32.totalorder %s132, %s148
      %p150 = scmp.eq.s32.totalorder %s30, 0
      %p151 = por %p149, %p150
      %s152 = ssub.s32 %s24, %s31
      %p153 = scmp.eq.s32.totalorder %s152, 0
      %s155 = sadd.s32 %s154, 1
      %s156 = scalar_select %p153, %s154, %s155
      %p159 = pneg %p153
      %p160 = scmp.eq.s32.totalorder %s24, 2
      %p161 = por %p159, %p160
      %p162 = scmp.ne.s32.totalorder %s154, %s157
      %p163 = scmp.eq.s32.totalorder %s24, 0
      %p164 = por %p162, %p163
      %p165 = scmp.ne.s32.totalorder %s154, %s157
      %p166 = scmp.eq.s32.totalorder %s29, 2
      %p167 = por %p165, %p166
      %p168 = scmp.ne.s32.totalorder %s157, %s158
      %p169 = scmp.eq.s32.totalorder %s29, 0
      %p170 = por %p168, %p169
      %p171 = scmp.ne.s32.totalorder %s157, %s158
      %p172 = scmp.eq.s32.totalorder %s30, 2
      %p173 = por %p171, %p172
      %p175 = scmp.ne.s32.totalorder %s158, %s174
      %p176 = scmp.eq.s32.totalorder %s30, 0
      %p177 = por %p175, %p176
      %s179 = sadd.s32 %s178, 1
      %p182 = scmp.eq.s32.totalorder %s24, 2
      %p183 = scmp.ne.s32.totalorder %s178, %s180
      %p184 = scmp.eq.s32.totalorder %s24, 0
      %p185 = por %p183, %p184
      %p186 = scmp.ne.s32.totalorder %s178, %s180
      %p187 = scmp.eq.s32.totalorder %s29, 2
      %p188 = por %p186, %p187
      %p189 = scmp.ne.s32.totalorder %s180, %s181
      %p190 = scmp.eq.s32.totalorder %s29, 0
      %p191 = por %p189, %p190
      %p192 = scmp.ne.s32.totalorder %s180, %s181
      %p193 = scmp.eq.s32.totalorder %s30, 2
      %p194 = por %p192, %p193
      %p196 = scmp.ne.s32.totalorder %s181, %s195
      %p197 = scmp.eq.s32.totalorder %s30, 0
      %p198 = por %p196, %p197
      %s200 = sadd.s32 %s199, 1
      %p203 = scmp.eq.s32.totalorder %s24, 2
      %p204 = scmp.ne.s32.totalorder %s199, %s201
      %p205 = scmp.eq.s32.totalorder %s24, 0
      %p206 = por %p204, %p205
      %p207 = scmp.ne.s32.totalorder %s199, %s201
      %p208 = scmp.eq.s32.totalorder %s29, 2
      %p209 = por %p207, %p208
      %p210 = scmp.ne.s32.totalorder %s201, %s202
      %p211 = scmp.eq.s32.totalorder %s29, 0
      %p212 = por %p210, %p211
      %p213 = scmp.ne.s32.totalorder %s201, %s202
      %p214 = scmp.eq.s32.totalorder %s30, 2
      %p215 = por %p213, %p214
      %p217 = scmp.ne.s32.totalorder %s202, %s216
      %p218 = scmp.eq.s32.totalorder %s30, 0
      %p219 = por %p217, %p218
      %s221 = sadd.s32 %s220, 1
      %p224 = scmp.eq.s32.totalorder %s24, 2
      %p225 = scmp.ne.s32.totalorder %s220, %s222
      %p226 = scmp.eq.s32.totalorder %s24, 0
      %p227 = por %p225, %p226
      %p228 = scmp.ne.s32.totalorder %s220, %s222
      %p229 = scmp.eq.s32.totalorder %s29, 2
      %p230 = por %p228, %p229
      %p231 = scmp.ne.s32.totalorder %s222, %s223
      %p232 = scmp.eq.s32.totalorder %s29, 0
      %p233 = por %p231, %p232
      %p234 = scmp.ne.s32.totalorder %s222, %s223
      %p235 = scmp.eq.s32.totalorder %s30, 2
      %p236 = por %p234, %p235
      %p238 = scmp.ne.s32.totalorder %s223, %s237
      %p239 = scmp.eq.s32.totalorder %s30, 0
      %p240 = por %p238, %p239
      %p241 = scmp.le.s32.totalorder 1, %s24
      %p242 = scmp.lt.s32.totalorder %s24, 4
      %p243 = pnand %p241, %p242
      %p244 = pneg %p243
      // Predicated region
      $region9: #{tpu_custom_call.1} parent=5 // pred_check
        _
      $region10: #{tpu_custom_call.1} parent=5 // pred_check_branch
        %246 = sbr.rel (%p243) target = $region12
      $region11: #{tpu_custom_call.1} parent=5 // pred_region
        %s247 = ssub.s32 %s24, 1
        // Predicated region
        $region13: #{tpu_custom_call.1} parent=11 // pred_check
          %p248 = pneg %p97
        $region14: #{tpu_custom_call.1} parent=11 // pred_check_branch
          %250 = sbr.rel (%p248) target = $region16
        $region15: #{tpu_custom_call.1} parent=11 // pred_region
          %s252 = ssub.s32 1024, 1024
          %253 = vsyncadd [#allocation6], %s252
          %s254 = sshll.u32 [#allocation5], 4
          %s255 = int_to_ptr.vmem [resolvable:$true] %s254
          %260 = dma.hbm_to_vmem [thread:$0]  %s2, 1024, %s255, [#allocation6], 64, 64, 4
        $region16: #{tpu_custom_call.1} parent=11 // pred_fallthru
          _
        // Predicated region
        $region17: #{tpu_custom_call.1} parent=11 // pred_check
          %p261 = pneg %p118
        $region18: #{tpu_custom_call.1} parent=11 // pred_check_branch
          %263 = sbr.rel (%p261) target = $region20
        $region19: #{tpu_custom_call.1} parent=11 // pred_region
          %s265 = ssub.s32 16, 16
          %266 = vsyncadd [#allocation8], %s265
          %s268 = sshll.u32 %s3, 4
          %s269 = int_to_ptr.vmem [resolvable:$true] %s268
          %271 = dma.vmem_to_smem %s269, 16, [#allocation9], [#allocation8]
        $region20: #{tpu_custom_call.1} parent=11 // pred_fallthru
          _
      $region12: #{tpu_custom_call.1} parent=5 // pred_fallthru
        _
      %p272 = scmp.lt.s32.totalorder %s24, 3
      // Predicated region
      $region21: #{tpu_custom_call.1} parent=5 // pred_check
        %p273 = pneg %p272
      $region22: #{tpu_custom_call.1} parent=5 // pred_check_branch
        %275 = sbr.rel (%p273) target = $region24
      $region23: #{tpu_custom_call.1} parent=5 // pred_region
        // Predicated region
        $region25: #{tpu_custom_call.1} parent=23 // pred_check
          %p276 = pneg %p44
        $region26: #{tpu_custom_call.1} parent=23 // pred_check_branch
          %278 = sbr.rel (%p276) target = $region28
        $region27: #{tpu_custom_call.1} parent=23 // pred_region
          %s279 = smul.u32 2, %s24
          %p280 = scmp.lt.s32.totalorder %s279, 5
          %s281 = scalar_select %p280, %s279, 5
          %s282 = smul.addr %s281, 8
          %s283 = scalar_lea.vmem %s0, %s282
          %s284 = smul.u32 2, %s24
        $region28: #{tpu_custom_call.1} parent=23 // pred_fallthru
          _
        // Predicated region
        $region29: #{tpu_custom_call.1} parent=23 // pred_check
          %p285 = pneg %p70
        $region30: #{tpu_custom_call.1} parent=23 // pred_check_branch
          %287 = sbr.rel (%p285) target = $region32
        $region31: #{tpu_custom_call.1} parent=23 // pred_region
          %s288 = smul.u32 2, %s24
          %p289 = scmp.lt.s32.totalorder %s288, 5
          %s290 = scalar_select %p289, %s288, 5
          %s291 = smul.addr %s290, 8
          %s292 = scalar_lea.vmem %s1, %s291
          %s293 = smul.u32 2, %s24
        $region32: #{tpu_custom_call.1} parent=23 // pred_fallthru
          _
      $region24: #{tpu_custom_call.1} parent=5 // pred_fallthru
        _
      %p294 = scmp.le.s32.totalorder 1, %s24
      %p295 = scmp.lt.s32.totalorder %s24, 4
      %p296 = pnand %p294, %p295
      %p297 = pneg %p296
      // Predicated region
      $region33: #{tpu_custom_call.1} parent=5 // pred_check
        _
      $region34: #{tpu_custom_call.1} parent=5 // pred_check_branch
        %299 = sbr.rel (%p296) target = $region36
      $region35: #{tpu_custom_call.1} parent=5 // pred_region
        %s300 = ssub.s32 %s24, 1
        // Predicated region
        $region37: #{tpu_custom_call.1} parent=35 // pred_check
          %p301 = pneg %p97
        $region38: #{tpu_custom_call.1} parent=35 // pred_check_branch
          %303 = sbr.rel (%p301) target = $region40
        $region39: #{tpu_custom_call.1} parent=35 // pred_region
          %304 = dma.done [#allocation6], 1024
        $region40: #{tpu_custom_call.1} parent=35 // pred_fallthru
          _
        // Predicated region
        $region41: #{tpu_custom_call.1} parent=35 // pred_check
          %p305 = pneg %p118
        $region42: #{tpu_custom_call.1} parent=35 // pred_check_branch
          %307 = sbr.rel (%p305) target = $region44
        $region43: #{tpu_custom_call.1} parent=35 // pred_region
          %308 = dma.done [#allocation8], 16
        $region44: #{tpu_custom_call.1} parent=35 // pred_fallthru
          _
        %309 = sfence
        %s310 = smul.u32 2, %s29
        %p311 = scmp.lt.s32.totalorder %s310, 5
        %s312 = scalar_select %p311, %s310, 5
        %s313 = smul.addr %s312, 8
        %s314 = scalar_lea.vmem %s0, %s313
        %p315 = pneg %p50
        %p316 = pneg %p47
        %s317 = smul.u32 2, %s29
        %p318 = scmp.lt.s32.totalorder %s317, 5
        %s319 = scalar_select %p318, %s317, 5
        %s320 = smul.addr %s319, 8
        %s321 = scalar_lea.vmem %s1, %s320
        %p322 = pneg %p76
        %p323 = pneg %p73
        %p324 = pneg %p97
        %p325 = pneg %p94
        %p326 = pneg %p118
        %p327 = pneg %p115
        %p328 = pneg %p144
        %p329 = pneg %p141
        %s330 = sand.u32 %s131, 1
        %s331 = scalar_lea.sflag [#allocation7], %s330
        %s332 = sand.u32 %s131, 1
        %s333 = smul.addr %s332, 16
        %s334 = scalar_lea.vmem [#allocation10], %s333
        %p335 = pneg %p170
        %p336 = pneg %p167
        %s337 = sand.u32 %s29, 1
        %s338 = scalar_lea.sflag [#allocation12], %s337
        %s339 = sand.u32 %s157, 1
        %s340 = smul.addr %s339, 16
        %s341 = scalar_lea.vmem [#allocation11], %s340
        %p342 = pneg %p191
        %p343 = pneg %p188
        %p344 = pneg %p212
        %p345 = pneg %p209
        %p346 = pneg %p233
        %p347 = pneg %p230
        %s348 = smul.u32 2, %s29
        %p349 = scmp.lt.s32.totalorder %s348, 5
        %s350 = scalar_select %p349, %s348, 5
        %s351 = smul.addr %s350, 8
        %s352 = scalar_lea.vmem %s0, %s351
        %s353 = smul.u32 2, %s29
        %s354 = smul.u32 2, %s29
        %p355 = scmp.lt.s32.totalorder %s354, 5
        %s356 = scalar_select %p355, %s354, 5
        %s357 = smul.addr %s356, 8
        %s358 = scalar_lea.vmem %s1, %s357
        %s359 = smul.u32 2, %s29
        %s360 = smul.u32 2, %s29
        %s361 = smul.u32 2, %s29
        %s364 = sld [smem:[#allocation9]]
        %s365 = sld [smem:[#allocation9 + $0x1]]
        %p366 = scmp.eq.s32.totalorder %s29, 0
        // Predicated region
        $region45: #{tpu_custom_call.1} parent=35 // pred_check
          %p367 = pneg %p366
        $region46: #{tpu_custom_call.1} parent=35 // pred_check_branch
          %369 = sbr.rel (%p367) target = $region48
        $region47: #{tpu_custom_call.1} parent=35 // pred_region
          %370 = vst [vmem:[#allocation2] sm:$0x1] inf
          %371 = vst [vmem:[#allocation3] sm:$0x1] 0
          %372 = vst [vmem:[#allocation4] sm:$0xff] 0
          %373 = vst [vmem:[#allocation4 + $0x8] sm:$0xff] 0
          %374 = vst [vmem:[#allocation4 + $0x10] sm:$0xff] 0
          %375 = vst [vmem:[#allocation4 + $0x18] sm:$0xff] 0
          %376 = vst [vmem:[#allocation4 + $0x20] sm:$0xff] 0
          %377 = vst [vmem:[#allocation4 + $0x28] sm:$0xff] 0
          %378 = vst [vmem:[#allocation4 + $0x30] sm:$0xff] 0
          %379 = vst [vmem:[#allocation4 + $0x38] sm:$0xff] 0
        $region48: #{tpu_custom_call.1} parent=35 // pred_fallthru
          _
        %v380 = vld [vmem:[%s352] sm:$0xff]
        %v381 = vld [vmem:[%s352 + $0x8] sm:$0xff]
        %v382 = vmul.f32 %v380, %v380
        %v383 = vmul.f32 %v381, %v381
        %384 = vadd.xlane.f32.xlu0 %v382
        %v385 = vpop.xlane.xlu0 %384
        %386 = vadd.xlane.f32.xlu0 %v383
        %v387 = vpop.xlane.xlu0 %386
        %v388 = vrsqrt.pop %v385
        %v389 = vmul.f32 %v385, %v388
        %vm390 = vcmp.eq.f32.partialorder %v385, inf
        %v391 = vsel %vm390, %v385, %v389
        %vm392 = vcmp.eq.f32.partialorder %v385, 0.0
        %v393 = vand.u32 %v385, 2147483648
        %v394 = vsel %vm392, %v393, %v391
        %v395 = vrsqrt.pop %v387
        %v396 = vmul.f32 %v387, %v395
        %vm397 = vcmp.eq.f32.partialorder %v387, inf
        %v398 = vsel %vm397, %v387, %v396
        %vm399 = vcmp.eq.f32.partialorder %v387, 0.0
        %v400 = vand.u32 %v387, 2147483648
        %v401 = vsel %vm399, %v400, %v398
        %v402 = vadd.f32 %v394, 1e-12
        %v403 = vadd.f32 %v401, 1e-12
        %v404 = vrcp.pop %v402
        %v405 = vmul.f32 %v380, %v404
        %v406 = vrcp.pop %v403
        %v407 = vmul.f32 %v381, %v406
        %408 = vst [vmem:[%s334] sm:$0xff] %v405
        %409 = vst [vmem:[%s334 + $0x8] sm:$0xff] %v407
        %v410 = vpack.c.bf16 %v407, %v405
        %v411 = vld [vmem:[#allocation5] sm:$0xf]
        %v412 = vld [vmem:[#allocation5 + $0x4] sm:$0xf]
        %v413 = vld [vmem:[#allocation5 + $0x8] sm:$0xf]
        %v414 = vld [vmem:[#allocation5 + $0xc] sm:$0xf]
        %v415 = vld [vmem:[#allocation5 + $0x10] sm:$0xf]
        %v416 = vld [vmem:[#allocation5 + $0x14] sm:$0xf]
        %v417 = vld [vmem:[#allocation5 + $0x18] sm:$0xf]
        %v418 = vld [vmem:[#allocation5 + $0x1c] sm:$0xf]
        %v419 = vld [vmem:[#allocation5 + $0x20] sm:$0xf]
        %v420 = vld [vmem:[#allocation5 + $0x24] sm:$0xf]
        %v421 = vld [vmem:[#allocation5 + $0x28] sm:$0xf]
        %v422 = vld [vmem:[#allocation5 + $0x2c] sm:$0xf]
        %v423 = vld [vmem:[#allocation5 + $0x30] sm:$0xf]
        %v424 = vld [vmem:[#allocation5 + $0x34] sm:$0xf]
        %v425 = vld [vmem:[#allocation5 + $0x38] sm:$0xf]
        %v426 = vld [vmem:[#allocation5 + $0x3c] sm:$0xf]
        %v443 = vunpack.c.l.b16 %v411
        %v444 = vunpack.c.l.b16 %v412
        %v445 = vunpack.c.l.b16 %v413
        %v446 = vunpack.c.l.b16 %v414
        %v447 = vunpack.c.l.b16 %v415
        %v448 = vunpack.c.l.b16 %v416
        %v449 = vunpack.c.l.b16 %v417
        %v450 = vunpack.c.l.b16 %v418
        %v451 = vunpack.c.l.b16 %v419
        %v452 = vunpack.c.l.b16 %v420
        %v453 = vunpack.c.l.b16 %v421
        %v454 = vunpack.c.l.b16 %v422
        %v455 = vunpack.c.l.b16 %v423
        %v456 = vunpack.c.l.b16 %v424
        %v457 = vunpack.c.l.b16 %v425
        %v458 = vunpack.c.l.b16 %v426
        %v459 = vpack.c.b16 %v444, %v443
        %v460 = vpack.c.b16 %v446, %v445
        %v461 = vpack.c.b16 %v448, %v447
        %v462 = vpack.c.b16 %v450, %v449
        %v463 = vpack.c.b16 %v452, %v451
        %v464 = vpack.c.b16 %v454, %v453
        %v465 = vpack.c.b16 %v456, %v455
        %v466 = vpack.c.b16 %v458, %v457
        %475 = vmatprep.subr.bf16.mxu0 0
        %476 = vmatpush1.bf16.xpose.msra.mxu0 %v459
        %477 = vmatprep.subr.bf16.mxu0 0
        %478 = vmatpush1.bf16.xpose.msra.mxu0 %v460
        %479 = vmatprep.subr.bf16.mxu0 0
        %480 = vmatpush1.bf16.xpose.msra.mxu0 %v461
        %481 = vmatprep.subr.bf16.mxu0 0
        %482 = vmatpush1.bf16.xpose.msra.mxu0 %v462
        %483 = vmatprep.subr.bf16.mxu0 0
        %484 = vmatpush1.bf16.xpose.msra.mxu0 %v463
        %485 = vmatprep.subr.bf16.mxu0 0
        %486 = vmatpush1.bf16.xpose.msra.mxu0 %v464
        %487 = vmatprep.subr.bf16.mxu0 0
        %488 = vmatpush1.bf16.xpose.msra.mxu0 %v465
        %489 = vmatprep.subr.bf16.mxu0 0
        %490 = vmatpush1.bf16.xpose.msra.mxu0 %v466
        %491 = vmatprep.subr.bf16.mxu0 0
        %492 = vmatpush1.bf16.xpose.msra.mxu0 0
        %493 = vmatprep.subr.bf16.mxu0 0
        %494 = vmatpush1.bf16.xpose.msra.mxu0 0
        %495 = vmatprep.subr.bf16.mxu0 0
        %496 = vmatpush1.bf16.xpose.msra.mxu0 0
        %497 = vmatprep.subr.bf16.mxu0 0
        %498 = vmatpush1.bf16.xpose.msra.mxu0 0
        %499 = vmatprep.subr.bf16.mxu0 0
        %500 = vmatpush1.bf16.xpose.msra.mxu0 0
        %501 = vmatprep.subr.bf16.mxu0 0
        %502 = vmatpush1.bf16.xpose.msra.mxu0 0
        %503 = vmatprep.subr.bf16.mxu0 0
        %504 = vmatpush1.bf16.xpose.msra.mxu0 0
        %505 = vmatprep.subr.bf16.mxu0 0
        %506 = vmatpush1.bf16.xpose.msra.mxu0 0
        %507 = vmatprep.mubr.bf16.mxu0 0
        %508 = vmatmul.mubr.bf16.gmra.mrb[0].mxu0 %v410
        %v509 = vpop.f32.mrb[0].mxu0
        %v510 = vadd.f32 0.0, %v509
        %v511 = vpop.f32.mrb[0].mxu0
        %v512 = vpop.f32.mrb[0].mxu0
        %v513 = vadd.f32 0.0, %v512
        %v514 = vpop.f32.mrb[0].mxu0
        %515 = vdwg.mxu0
        %v516 = vstv %s364
        %v517 = vmul.f32 %v510, %v516
        %v518 = vmul.f32 %v513, %v516
        %v519 = vstv %s365
        %v520 = vadd.f32 %v517, %v519
        %v521 = vadd.f32 %v518, %v519
        %522 = vst [vmem:[%s341] sm:$0xff] %v520
        %523 = vst [vmem:[%s341 + $0x8] sm:$0xff] %v521
        %v524 = vld [vmem:[%s358] sm:$0xff]
        %v525 = vld [vmem:[%s358 + $0x8] sm:$0xff]
        %v526 = vlaneseq
        %v527 = vand.u32 %v526, 127
        %528 = vset.pattern.permute.xlu0 0
        %529 = vperm.xlu0 %528, %v524
        %v530 = vpop.permute.xlu0 %529
        %531 = vset.pattern.permute.xlu0 0
        %532 = vperm.xlu0 %531, %v525
        %v533 = vpop.permute.xlu0 %532
        %vm534 = vcmp.eq.s32.totalorder %v530, %v527
        %vm535 = vcmp.eq.s32.totalorder %v533, %v527
        %v536 = vsel %vm534, %v520, 0.0
        %v537 = vsel %vm535, %v521, 0.0
        %538 = vadd.xlane.f32.xlu0 %v536
        %v539 = vpop.xlane.xlu0 %538
        %540 = vadd.xlane.f32.xlu0 %v537
        %v541 = vpop.xlane.xlu0 %540
        %v542 = vsub.f32 0.0, %v539
        %v543 = vsub.f32 0.0, %v541
        %v544 = vmax.f32 %v542, 0.0
        %v545 = vmax.f32 %v543, 0.0
        %v546 = vand.u32 2147483647, %v542
        %v547 = vand.u32 2147483647, %v543
        %v548 = vsub.f32 0.0, %v546
        %v549 = vsub.f32 0.0, %v547
        %v550 = vmul.f32 %v548, 1.442695
        %v551 = vpow.pop %v550
        %v552 = vmul.f32 %v549, 1.442695
        %v553 = vpow.pop %v552
        %v554 = vadd.f32 %v551, 1.0
        %v555 = vadd.f32 %v553, 1.0
        %v556 = vlog2.pop %v554
        %v557 = vmul.f32 %v556, 0.6931472
        %v558 = vlog2.pop %v555
        %v559 = vmul.f32 %v558, 0.6931472
        %v560 = vadd.f32 %v544, %v557
        %v561 = vadd.f32 %v545, %v559
        %v562 = vsel %vm534, %v560, inf
        %v563 = vsel %vm535, %v561, inf
        %v564 = vmin.f32 %v562, %v563
        %v565 = vrot.slane %v564, 4
        %v566 = vmin.f32 %v564, %v565
        %v567 = vrot.slane %v566, 2
        %v568 = vmin.f32 %v566, %v567
        %v569 = vrot.slane %v568, 1
        %v570 = vmin.f32 %v568, %v569
        %v571 = vlaneseq
        %v572 = vshrl.u32 %v571, 7
        %v573 = vadd.s32 %v572, 8
        %vm574 = vcmp.eq.f32.partialorder %v562, %v570
        %vm575 = vcmp.eq.f32.partialorder %v563, %v570
        %v576 = vsel %vm574, %v572, 16
        %v577 = vsel %vm575, %v573, 16
        %vm578 = vcmp.lt.s32.totalorder %v576, %v577
        %v579 = vsel %vm578, %v576, %v577
        %v580 = vrot.slane %v579, 4
        %vm581 = vcmp.lt.s32.totalorder %v579, %v580
        %v582 = vsel %vm581, %v579, %v580
        %v583 = vrot.slane %v582, 2
        %vm584 = vcmp.lt.s32.totalorder %v582, %v583
        %v585 = vsel %vm584, %v582, %v583
        %v586 = vrot.slane %v585, 1
        %vm587 = vcmp.lt.s32.totalorder %v585, %v586
        %v588 = vsel %vm587, %v585, %v586
        %v589 = vld [vmem:[#allocation2] sm:$0x1]
        %vm590 = vcmp.lt.f32.partialorder %v570, %v589
        %s591 = smul.u32 %s29, 16
        %v592 = vstv %s591
        %v593 = vadd.s32 %v588, %v592
        %v594 = vld [vmem:[#allocation3] sm:$0x1]
        %v595 = vsel %vm590, %v593, %v594
        %596 = vst [vmem:[#allocation3] sm:$0x1] %v595
        %v597 = vld [vmem:[#allocation2] sm:$0x1]
        %v598 = vsel %vm590, %v570, %v597
        %599 = vst [vmem:[#allocation2] sm:$0x1] %v598
        %vm600 = vcmp.eq.s32.totalorder %v572, %v588
        %vm601 = vcmp.eq.s32.totalorder %v573, %v588
        %v602 = vsel %vm590, 1, 0
        %v603 = vlaneseq
        %v604 = vshrl.u32 %v603, 7
        %v605 = vsub.s32 0, %v604
        %v606 = vrot.slane %v602, %v605
        %vm607 = vcmp.eq.s32.totalorder %v606, 1
        %vm608 = vmand %vm600, %vm607
        %vm609 = vmand %vm601, %vm607
        %v610 = vsel %vm608, 1, 0
        %v611 = vsel %vm609, 1, 0
        %v612 = vcvt.s32.f32 %v610
        %v613 = vcvt.s32.f32 %v611
        %v614 = vpack.c.bf16 %v613, %v612
        %615 = vxpose.xlu0.c.b16.start [1/8] %v614, 128
        %616 = vxpose.xlu0.c.b16.cont [2/8] 0, 128
        %617 = vxpose.xlu0.c.b16.cont [3/8] 0, 128
        %618 = vxpose.xlu0.c.b16.cont [4/8] 0, 128
        %619 = vxpose.xlu0.c.b16.cont [5/8] 0, 128
        %620 = vxpose.xlu0.c.b16.cont [6/8] 0, 128
        %621 = vxpose.xlu0.c.b16.cont [7/8] 0, 128
        %622 = vxpose.xlu0.c.b16.end [8/8] 0, 128
        %v623 = vpop.trf.xlu0
        %v624 = vpop.trf.xlu0
        %v625 = vpop.trf.xlu0
        %v626 = vpop.trf.xlu0
        %v627 = vpop.trf.xlu0
        %v628 = vpop.trf.xlu0
        %v629 = vpop.trf.xlu0
        %v630 = vpop.trf.xlu0
        %vm631 = vcmask 130048
        %v633 = vsel %vm631, %v623, 0
        %v636 = vsel %vm631, %v624, 0
        %v639 = vsel %vm631, %v625, 0
        %v642 = vsel %vm631, %v626, 0
        %v645 = vsel %vm631, %v627, 0
        %v648 = vsel %vm631, %v628, 0
        %v651 = vsel %vm631, %v629, 0
        %v654 = vsel %vm631, %v630, 0
        %656 = vmatprep.subr.bf16.mxu0 0
        %657 = vmatpush1.bf16.msra.mxu0 1065369472
        %658 = vmatprep.subr.bf16.mxu0 0
        %659 = vmatpush1.bf16.msra.mxu0 0
        %660 = vmatprep.subr.bf16.mxu0 0
        %661 = vmatpush1.bf16.msra.mxu0 0
        %662 = vmatprep.subr.bf16.mxu0 0
        %663 = vmatpush1.bf16.msra.mxu0 0
        %664 = vmatprep.subr.bf16.mxu0 0
        %665 = vmatpush1.bf16.msra.mxu0 0
        %666 = vmatprep.subr.bf16.mxu0 0
        %667 = vmatpush1.bf16.msra.mxu0 0
        %668 = vmatprep.subr.bf16.mxu0 0
        %669 = vmatpush1.bf16.msra.mxu0 0
        %670 = vmatprep.subr.bf16.mxu0 0
        %671 = vmatpush1.bf16.msra.mxu0 0
        %672 = vmatprep.subr.bf16.mxu0 0
        %673 = vmatpush1.bf16.msra.mxu0 0
        %674 = vmatprep.subr.bf16.mxu0 0
        %675 = vmatpush1.bf16.msra.mxu0 0
        %676 = vmatprep.subr.bf16.mxu0 0
        %677 = vmatpush1.bf16.msra.mxu0 0
        %678 = vmatprep.subr.bf16.mxu0 0
        %679 = vmatpush1.bf16.msra.mxu0 0
        %680 = vmatprep.subr.bf16.mxu0 0
        %681 = vmatpush1.bf16.msra.mxu0 0
        %682 = vmatprep.subr.bf16.mxu0 0
        %683 = vmatpush1.bf16.msra.mxu0 0
        %684 = vmatprep.subr.bf16.mxu0 0
        %685 = vmatpush1.bf16.msra.mxu0 0
        %686 = vmatprep.subr.bf16.mxu0 0
        %687 = vmatpush1.bf16.msra.mxu0 0
        %688 = vmatprep.mubr.bf16.mxu0 0
        %689 = vmatmul.mubr.bf16.gmra.mrb[0].mxu0 %v633
        %v690 = vpop.f32.mrb[0].mxu0
        %v691 = vadd.f32 0.0, %v690
        %v692 = vpop.f32.mrb[0].mxu0
        %v693 = vpop.f32.mrb[0].mxu0
        %v694 = vadd.f32 0.0, %v693
        %v695 = vpop.f32.mrb[0].mxu0
        %696 = vmatprep.mubr.bf16.mxu0 0
        %697 = vmatmul.mubr.bf16.gmra.mrb[0].mxu0 %v636
        %v698 = vpop.f32.mrb[0].mxu0
        %v699 = vadd.f32 0.0, %v698
        %v700 = vpop.f32.mrb[0].mxu0
        %v701 = vpop.f32.mrb[0].mxu0
        %v702 = vadd.f32 0.0, %v701
        %v703 = vpop.f32.mrb[0].mxu0
        %704 = vmatprep.mubr.bf16.mxu0 0
        %705 = vmatmul.mubr.bf16.gmra.mrb[0].mxu0 %v639
        %v706 = vpop.f32.mrb[0].mxu0
        %v707 = vadd.f32 0.0, %v706
        %v708 = vpop.f32.mrb[0].mxu0
        %v709 = vpop.f32.mrb[0].mxu0
        %v710 = vadd.f32 0.0, %v709
        %v711 = vpop.f32.mrb[0].mxu0
        %712 = vmatprep.mubr.bf16.mxu0 0
        %713 = vmatmul.mubr.bf16.gmra.mrb[0].mxu0 %v642
        %v714 = vpop.f32.mrb[0].mxu0
        %v715 = vadd.f32 0.0, %v714
        %v716 = vpop.f32.mrb[0].mxu0
        %v717 = vpop.f32.mrb[0].mxu0
        %v718 = vadd.f32 0.0, %v717
        %v719 = vpop.f32.mrb[0].mxu0
        %720 = vmatprep.mubr.bf16.mxu0 0
        %721 = vmatmul.mubr.bf16.gmra.mrb[0].mxu0 %v645
        %v722 = vpop.f32.mrb[0].mxu0
        %v723 = vadd.f32 0.0, %v722
        %v724 = vpop.f32.mrb[0].mxu0
        %v725 = vpop.f32.mrb[0].mxu0
        %v726 = vadd.f32 0.0, %v725
        %v727 = vpop.f32.mrb[0].mxu0
        %728 = vmatprep.mubr.bf16.mxu0 0
        %729 = vmatmul.mubr.bf16.gmra.mrb[0].mxu0 %v648
        %v730 = vpop.f32.mrb[0].mxu0
        %v731 = vadd.f32 0.0, %v730
        %v732 = vpop.f32.mrb[0].mxu0
        %v733 = vpop.f32.mrb[0].mxu0
        %v734 = vadd.f32 0.0, %v733
        %v735 = vpop.f32.mrb[0].mxu0
        %736 = vmatprep.mubr.bf16.mxu0 0
        %737 = vmatmul.mubr.bf16.gmra.mrb[0].mxu0 %v651
        %v738 = vpop.f32.mrb[0].mxu0
        %v739 = vadd.f32 0.0, %v738
        %v740 = vpop.f32.mrb[0].mxu0
        %v741 = vpop.f32.mrb[0].mxu0
        %v742 = vadd.f32 0.0, %v741
        %v743 = vpop.f32.mrb[0].mxu0
        %744 = vmatprep.mubr.bf16.mxu0 0
        %745 = vmatmul.mubr.bf16.gmra.mrb[0].mxu0 %v654
        %v746 = vpop.f32.mrb[0].mxu0
        %v747 = vadd.f32 0.0, %v746
        %v748 = vpop.f32.mrb[0].mxu0
        %v749 = vpop.f32.mrb[0].mxu0
        %v750 = vadd.f32 0.0, %v749
        %v751 = vpop.f32.mrb[0].mxu0
        %752 = vdwg.mxu0
        %v753 = vsub.f32 1.0, %v691
        %v754 = vsub.f32 1.0, %v694
        %v755 = vsub.f32 1.0, %v699
        %v756 = vsub.f32 1.0, %v702
        %v757 = vsub.f32 1.0, %v707
        %v758 = vsub.f32 1.0, %v710
        %v759 = vsub.f32 1.0, %v715
        %v760 = vsub.f32 1.0, %v718
        %v761 = vsub.f32 1.0, %v723
        %v762 = vsub.f32 1.0, %v726
        %v763 = vsub.f32 1.0, %v731
        %v764 = vsub.f32 1.0, %v734
        %v765 = vsub.f32 1.0, %v739
        %v766 = vsub.f32 1.0, %v742
        %v767 = vsub.f32 1.0, %v747
        %v768 = vsub.f32 1.0, %v750
        %v769 = vld [vmem:[#allocation4] sm:$0xff]
        %v770 = vld [vmem:[#allocation4 + $0x8] sm:$0xff]
        %v771 = vld [vmem:[#allocation4 + $0x10] sm:$0xff]
        %v772 = vld [vmem:[#allocation4 + $0x18] sm:$0xff]
        %v773 = vld [vmem:[#allocation4 + $0x20] sm:$0xff]
        %v774 = vld [vmem:[#allocation4 + $0x28] sm:$0xff]
        %v775 = vld [vmem:[#allocation4 + $0x30] sm:$0xff]
        %v776 = vld [vmem:[#allocation4 + $0x38] sm:$0xff]
        %v777 = vunpack.c.l.bf16 %v769
        %v778 = vunpack.c.h.bf16 %v769
        %v779 = vunpack.c.l.bf16 %v770
        %v780 = vunpack.c.h.bf16 %v770
        %v781 = vunpack.c.l.bf16 %v771
        %v782 = vunpack.c.h.bf16 %v771
        %v783 = vunpack.c.l.bf16 %v772
        %v784 = vunpack.c.h.bf16 %v772
        %v785 = vunpack.c.l.bf16 %v773
        %v786 = vunpack.c.h.bf16 %v773
        %v787 = vunpack.c.l.bf16 %v774
        %v788 = vunpack.c.h.bf16 %v774
        %v789 = vunpack.c.l.bf16 %v775
        %v790 = vunpack.c.h.bf16 %v775
        %v791 = vunpack.c.l.bf16 %v776
        %v792 = vunpack.c.h.bf16 %v776
        %794 = vset.pattern.permute.xlu0 0
        %795 = vperm.xlu0 %794, %v753
        %v796 = vpop.permute.xlu0 %795
        %799 = vset.pattern.permute.xlu0 0
        %800 = vperm.xlu0 %799, %v754
        %v801 = vpop.permute.xlu0 %800
        %804 = vset.pattern.permute.xlu0 0
        %805 = vperm.xlu0 %804, %v755
        %v806 = vpop.permute.xlu0 %805
        %809 = vset.pattern.permute.xlu0 0
        %810 = vperm.xlu0 %809, %v756
        %v811 = vpop.permute.xlu0 %810
        %814 = vset.pattern.permute.xlu0 0
        %815 = vperm.xlu0 %814, %v757
        %v816 = vpop.permute.xlu0 %815
        %819 = vset.pattern.permute.xlu0 0
        %820 = vperm.xlu0 %819, %v758
        %v821 = vpop.permute.xlu0 %820
        %824 = vset.pattern.permute.xlu0 0
        %825 = vperm.xlu0 %824, %v759
        %v826 = vpop.permute.xlu0 %825
        %829 = vset.pattern.permute.xlu0 0
        %830 = vperm.xlu0 %829, %v760
        %v831 = vpop.permute.xlu0 %830
        %834 = vset.pattern.permute.xlu0 0
        %835 = vperm.xlu0 %834, %v761
        %v836 = vpop.permute.xlu0 %835
        %839 = vset.pattern.permute.xlu0 0
        %840 = vperm.xlu0 %839, %v762
        %v841 = vpop.permute.xlu0 %840
        %844 = vset.pattern.permute.xlu0 0
        %845 = vperm.xlu0 %844, %v763
        %v846 = vpop.permute.xlu0 %845
        %849 = vset.pattern.permute.xlu0 0
        %850 = vperm.xlu0 %849, %v764
        %v851 = vpop.permute.xlu0 %850
        %854 = vset.pattern.permute.xlu0 0
        %855 = vperm.xlu0 %854, %v765
        %v856 = vpop.permute.xlu0 %855
        %859 = vset.pattern.permute.xlu0 0
        %860 = vperm.xlu0 %859, %v766
        %v861 = vpop.permute.xlu0 %860
        %864 = vset.pattern.permute.xlu0 0
        %865 = vperm.xlu0 %864, %v767
        %v866 = vpop.permute.xlu0 %865
        %869 = vset.pattern.permute.xlu0 0
        %870 = vperm.xlu0 %869, %v768
        %v871 = vpop.permute.xlu0 %870
        %v873 = vmul.f32 %v796, %v777
        %v874 = vmul.f32 %v801, %v778
        %v875 = vmul.f32 %v806, %v779
        %v876 = vmul.f32 %v811, %v780
        %v877 = vmul.f32 %v816, %v781
        %v878 = vmul.f32 %v821, %v782
        %v879 = vmul.f32 %v826, %v783
        %v880 = vmul.f32 %v831, %v784
        %v881 = vmul.f32 %v836, %v785
        %v882 = vmul.f32 %v841, %v786
        %v883 = vmul.f32 %v846, %v787
        %v884 = vmul.f32 %v851, %v788
        %v885 = vmul.f32 %v856, %v789
        %v886 = vmul.f32 %v861, %v790
        %v887 = vmul.f32 %v866, %v791
        %v888 = vmul.f32 %v871, %v792
        %889 = vmatprep.subr.bf16.mxu0 0
        %890 = vmatpush1.bf16.msra.mxu0 %v410
        %891 = vmatprep.subr.bf16.mxu0 0
        %892 = vmatpush1.bf16.msra.mxu0 0
        %893 = vmatprep.subr.bf16.mxu0 0
        %894 = vmatpush1.bf16.msra.mxu0 0
        %895 = vmatprep.subr.bf16.mxu0 0
        %896 = vmatpush1.bf16.msra.mxu0 0
        %897 = vmatprep.subr.bf16.mxu0 0
        %898 = vmatpush1.bf16.msra.mxu0 0
        %899 = vmatprep.subr.bf16.mxu0 0
        %900 = vmatpush1.bf16.msra.mxu0 0
        %901 = vmatprep.subr.bf16.mxu0 0
        %902 = vmatpush1.bf16.msra.mxu0 0
        %903 = vmatprep.subr.bf16.mxu0 0
        %904 = vmatpush1.bf16.msra.mxu0 0
        %905 = vmatprep.subr.bf16.mxu0 0
        %906 = vmatpush1.bf16.msra.mxu0 0
        %907 = vmatprep.subr.bf16.mxu0 0
        %908 = vmatpush1.bf16.msra.mxu0 0
        %909 = vmatprep.subr.bf16.mxu0 0
        %910 = vmatpush1.bf16.msra.mxu0 0
        %911 = vmatprep.subr.bf16.mxu0 0
        %912 = vmatpush1.bf16.msra.mxu0 0
        %913 = vmatprep.subr.bf16.mxu0 0
        %914 = vmatpush1.bf16.msra.mxu0 0
        %915 = vmatprep.subr.bf16.mxu0 0
        %916 = vmatpush1.bf16.msra.mxu0 0
        %917 = vmatprep.subr.bf16.mxu0 0
        %918 = vmatpush1.bf16.msra.mxu0 0
        %919 = vmatprep.subr.bf16.mxu0 0
        %920 = vmatpush1.bf16.msra.mxu0 0
        %921 = vmatprep.mubr.bf16.mxu0 0
        %922 = vmatmul.mubr.bf16.gmra.mrb[0].mxu0 %v633
        %v923 = vpop.f32.mrb[0].mxu0
        %v924 = vadd.f32 %v873, %v923
        %v925 = vpop.f32.mrb[0].mxu0
        %v926 = vpop.f32.mrb[0].mxu0
        %v927 = vadd.f32 %v874, %v926
        %v928 = vpop.f32.mrb[0].mxu0
        %929 = vmatprep.mubr.bf16.mxu0 0
        %930 = vmatmul.mubr.bf16.gmra.mrb[0].mxu0 %v636
        %v931 = vpop.f32.mrb[0].mxu0
        %v932 = vadd.f32 %v875, %v931
        %v933 = vpop.f32.mrb[0].mxu0
        %v934 = vpop.f32.mrb[0].mxu0
        %v935 = vadd.f32 %v876, %v934
        %v936 = vpop.f32.mrb[0].mxu0
        %937 = vmatprep.mubr.bf16.mxu0 0
        %938 = vmatmul.mubr.bf16.gmra.mrb[0].mxu0 %v639
        %v939 = vpop.f32.mrb[0].mxu0
        %v940 = vadd.f32 %v877, %v939
        %v941 = vpop.f32.mrb[0].mxu0
        %v942 = vpop.f32.mrb[0].mxu0
        %v943 = vadd.f32 %v878, %v942
        %v944 = vpop.f32.mrb[0].mxu0
        %945 = vmatprep.mubr.bf16.mxu0 0
        %946 = vmatmul.mubr.bf16.gmra.mrb[0].mxu0 %v642
        %v947 = vpop.f32.mrb[0].mxu0
        %v948 = vadd.f32 %v879, %v947
        %v949 = vpop.f32.mrb[0].mxu0
        %v950 = vpop.f32.mrb[0].mxu0
        %v951 = vadd.f32 %v880, %v950
        %v952 = vpop.f32.mrb[0].mxu0
        %953 = vmatprep.mubr.bf16.mxu0 0
        %954 = vmatmul.mubr.bf16.gmra.mrb[0].mxu0 %v645
        %v955 = vpop.f32.mrb[0].mxu0
        %v956 = vadd.f32 %v881, %v955
        %v957 = vpop.f32.mrb[0].mxu0
        %v958 = vpop.f32.mrb[0].mxu0
        %v959 = vadd.f32 %v882, %v958
        %v960 = vpop.f32.mrb[0].mxu0
        %961 = vmatprep.mubr.bf16.mxu0 0
        %962 = vmatmul.mubr.bf16.gmra.mrb[0].mxu0 %v648
        %v963 = vpop.f32.mrb[0].mxu0
        %v964 = vadd.f32 %v883, %v963
        %v965 = vpop.f32.mrb[0].mxu0
        %v966 = vpop.f32.mrb[0].mxu0
        %v967 = vadd.f32 %v884, %v966
        %v968 = vpop.f32.mrb[0].mxu0
        %969 = vmatprep.mubr.bf16.mxu0 0
        %970 = vmatmul.mubr.bf16.gmra.mrb[0].mxu0 %v651
        %v971 = vpop.f32.mrb[0].mxu0
        %v972 = vadd.f32 %v885, %v971
        %v973 = vpop.f32.mrb[0].mxu0
        %v974 = vpop.f32.mrb[0].mxu0
        %v975 = vadd.f32 %v886, %v974
        %v976 = vpop.f32.mrb[0].mxu0
        %977 = vmatprep.mubr.bf16.mxu0 0
        %978 = vmatmul.mubr.bf16.gmra.mrb[0].mxu0 %v654
        %v979 = vpop.f32.mrb[0].mxu0
        %v980 = vadd.f32 %v887, %v979
        %v981 = vpop.f32.mrb[0].mxu0
        %v982 = vpop.f32.mrb[0].mxu0
        %v983 = vadd.f32 %v888, %v982
        %v984 = vpop.f32.mrb[0].mxu0
        %985 = vdwg.mxu0
        %v986 = vpack.c.bf16 %v927, %v924
        %v987 = vpack.c.bf16 %v935, %v932
        %v988 = vpack.c.bf16 %v943, %v940
        %v989 = vpack.c.bf16 %v951, %v948
        %v990 = vpack.c.bf16 %v959, %v956
        %v991 = vpack.c.bf16 %v967, %v964
        %v992 = vpack.c.bf16 %v975, %v972
        %v993 = vpack.c.bf16 %v983, %v980
        %994 = vst [vmem:[#allocation4] sm:$0xff] %v986
        %995 = vst [vmem:[#allocation4 + $0x8] sm:$0xff] %v987
        %996 = vst [vmem:[#allocation4 + $0x10] sm:$0xff] %v988
        %997 = vst [vmem:[#allocation4 + $0x18] sm:$0xff] %v989
        %998 = vst [vmem:[#allocation4 + $0x20] sm:$0xff] %v990
        %999 = vst [vmem:[#allocation4 + $0x28] sm:$0xff] %v991
        %1000 = vst [vmem:[#allocation4 + $0x30] sm:$0xff] %v992
        %1001 = vst [vmem:[#allocation4 + $0x38] sm:$0xff] %v993
        %p1002 = scmp.eq.s32.totalorder %s29, 2
        // Predicated region
        $region49: #{tpu_custom_call.1} parent=35 // pred_check
          %p1003 = pneg %p1002
        $region50: #{tpu_custom_call.1} parent=35 // pred_check_branch
          %1005 = sbr.rel (%p1003) target = $region52
        $region51: #{tpu_custom_call.1} parent=35 // pred_region
          %v1006 = vld [vmem:[#allocation2] sm:$0x1]
          %vm1007 = vcmp.lt.f32.partialorder %v1006, inf
          %v1008 = vld [vmem:[#allocation3] sm:$0x1]
          %v1009 = vsel %vm1007, %v1008, 4294967295
          %1010 = vst [vmem:[#allocation13] sm:$0x1] %v1009
          %v1011 = vld [vmem:[#allocation4] sm:$0xff]
          %v1012 = vld [vmem:[#allocation4 + $0x8] sm:$0xff]
          %v1013 = vld [vmem:[#allocation4 + $0x10] sm:$0xff]
          %v1014 = vld [vmem:[#allocation4 + $0x18] sm:$0xff]
          %v1015 = vld [vmem:[#allocation4 + $0x20] sm:$0xff]
          %v1016 = vld [vmem:[#allocation4 + $0x28] sm:$0xff]
          %v1017 = vld [vmem:[#allocation4 + $0x30] sm:$0xff]
          %v1018 = vld [vmem:[#allocation4 + $0x38] sm:$0xff]
          %1019 = vmatprep.subr.bf16.mxu0 0
          %1020 = vmatpush1.bf16.xpose.msra.mxu0 %v459
          %1021 = vmatprep.subr.bf16.mxu0 0
          %1022 = vmatpush1.bf16.xpose.msra.mxu0 %v460
          %1023 = vmatprep.subr.bf16.mxu0 0
          %1024 = vmatpush1.bf16.xpose.msra.mxu0 %v461
          %1025 = vmatprep.subr.bf16.mxu0 0
          %1026 = vmatpush1.bf16.xpose.msra.mxu0 %v462
          %1027 = vmatprep.subr.bf16.mxu0 0
          %1028 = vmatpush1.bf16.xpose.msra.mxu0 %v463
          %1029 = vmatprep.subr.bf16.mxu0 0
          %1030 = vmatpush1.bf16.xpose.msra.mxu0 %v464
          %1031 = vmatprep.subr.bf16.mxu0 0
          %1032 = vmatpush1.bf16.xpose.msra.mxu0 %v465
          %1033 = vmatprep.subr.bf16.mxu0 0
          %1034 = vmatpush1.bf16.xpose.msra.mxu0 %v466
          %1035 = vmatprep.subr.bf16.mxu0 0
          %1036 = vmatpush1.bf16.xpose.msra.mxu0 0
          %1037 = vmatprep.subr.bf16.mxu0 0
          %1038 = vmatpush1.bf16.xpose.msra.mxu0 0
          %1039 = vmatprep.subr.bf16.mxu0 0
          %1040 = vmatpush1.bf16.xpose.msra.mxu0 0
          %1041 = vmatprep.subr.bf16.mxu0 0
          %1042 = vmatpush1.bf16.xpose.msra.mxu0 0
          %1043 = vmatprep.subr.bf16.mxu0 0
          %1044 = vmatpush1.bf16.xpose.msra.mxu0 0
          %1045 = vmatprep.subr.bf16.mxu0 0
          %1046 = vmatpush1.bf16.xpose.msra.mxu0 0
          %1047 = vmatprep.subr.bf16.mxu0 0
          %1048 = vmatpush1.bf16.xpose.msra.mxu0 0
          %1049 = vmatprep.subr.bf16.mxu0 0
          %1050 = vmatpush1.bf16.xpose.msra.mxu0 0
          %1051 = vmatprep.mubr.bf16.mxu0 0
          %1052 = vmatmul.mubr.bf16.gmra.mrb[0].mxu0 %v1011
          %v1053 = vpop.f32.mrb[0].mxu0
          %v1054 = vadd.f32 0.0, %v1053
          %v1055 = vpop.f32.mrb[0].mxu0
          %v1056 = vpop.f32.mrb[0].mxu0
          %v1057 = vadd.f32 0.0, %v1056
          %v1058 = vpop.f32.mrb[0].mxu0
          %1059 = vmatprep.mubr.bf16.mxu0 0
          %1060 = vmatmul.mubr.bf16.gmra.mrb[0].mxu0 %v1012
          %v1061 = vpop.f32.mrb[0].mxu0
          %v1062 = vadd.f32 0.0, %v1061
          %v1063 = vpop.f32.mrb[0].mxu0
          %v1064 = vpop.f32.mrb[0].mxu0
          %v1065 = vadd.f32 0.0, %v1064
          %v1066 = vpop.f32.mrb[0].mxu0
          %1067 = vmatprep.mubr.bf16.mxu0 0
          %1068 = vmatmul.mubr.bf16.gmra.mrb[0].mxu0 %v1013
          %v1069 = vpop.f32.mrb[0].mxu0
          %v1070 = vadd.f32 0.0, %v1069
          %v1071 = vpop.f32.mrb[0].mxu0
          %v1072 = vpop.f32.mrb[0].mxu0
          %v1073 = vadd.f32 0.0, %v1072
          %v1074 = vpop.f32.mrb[0].mxu0
          %1075 = vmatprep.mubr.bf16.mxu0 0
          %1076 = vmatmul.mubr.bf16.gmra.mrb[0].mxu0 %v1014
          %v1077 = vpop.f32.mrb[0].mxu0
          %v1078 = vadd.f32 0.0, %v1077
          %v1079 = vpop.f32.mrb[0].mxu0
          %v1080 = vpop.f32.mrb[0].mxu0
          %v1081 = vadd.f32 0.0, %v1080
          %v1082 = vpop.f32.mrb[0].mxu0
          %1083 = vmatprep.mubr.bf16.mxu0 0
          %1084 = vmatmul.mubr.bf16.gmra.mrb[0].mxu0 %v1015
          %v1085 = vpop.f32.mrb[0].mxu0
          %v1086 = vadd.f32 0.0, %v1085
          %v1087 = vpop.f32.mrb[0].mxu0
          %v1088 = vpop.f32.mrb[0].mxu0
          %v1089 = vadd.f32 0.0, %v1088
          %v1090 = vpop.f32.mrb[0].mxu0
          %1091 = vmatprep.mubr.bf16.mxu0 0
          %1092 = vmatmul.mubr.bf16.gmra.mrb[0].mxu0 %v1016
          %v1093 = vpop.f32.mrb[0].mxu0
          %v1094 = vadd.f32 0.0, %v1093
          %v1095 = vpop.f32.mrb[0].mxu0
          %v1096 = vpop.f32.mrb[0].mxu0
          %v1097 = vadd.f32 0.0, %v1096
          %v1098 = vpop.f32.mrb[0].mxu0
          %1099 = vmatprep.mubr.bf16.mxu0 0
          %1100 = vmatmul.mubr.bf16.gmra.mrb[0].mxu0 %v1017
          %v1101 = vpop.f32.mrb[0].mxu0
          %v1102 = vadd.f32 0.0, %v1101
          %v1103 = vpop.f32.mrb[0].mxu0
          %v1104 = vpop.f32.mrb[0].mxu0
          %v1105 = vadd.f32 0.0, %v1104
          %v1106 = vpop.f32.mrb[0].mxu0
          %1107 = vmatprep.mubr.bf16.mxu0 0
          %1108 = vmatmul.mubr.bf16.gmra.mrb[0].mxu0 %v1018
          %v1109 = vpop.f32.mrb[0].mxu0
          %v1110 = vadd.f32 0.0, %v1109
          %v1111 = vpop.f32.mrb[0].mxu0
          %v1112 = vpop.f32.mrb[0].mxu0
          %v1113 = vadd.f32 0.0, %v1112
          %v1114 = vpop.f32.mrb[0].mxu0
          %1115 = vdwg.mxu0
          %v1116 = vmul.f32 %v1054, %v516
          %v1117 = vmul.f32 %v1057, %v516
          %v1118 = vmul.f32 %v1062, %v516
          %v1119 = vmul.f32 %v1065, %v516
          %v1120 = vmul.f32 %v1070, %v516
          %v1121 = vmul.f32 %v1073, %v516
          %v1122 = vmul.f32 %v1078, %v516
          %v1123 = vmul.f32 %v1081, %v516
          %v1124 = vmul.f32 %v1086, %v516
          %v1125 = vmul.f32 %v1089, %v516
          %v1126 = vmul.f32 %v1094, %v516
          %v1127 = vmul.f32 %v1097, %v516
          %v1128 = vmul.f32 %v1102, %v516
          %v1129 = vmul.f32 %v1105, %v516
          %v1130 = vmul.f32 %v1110, %v516
          %v1131 = vmul.f32 %v1113, %v516
          %v1132 = vadd.f32 %v1116, %v519
          %v1133 = vadd.f32 %v1117, %v519
          %v1134 = vadd.f32 %v1118, %v519
          %v1135 = vadd.f32 %v1119, %v519
          %v1136 = vadd.f32 %v1120, %v519
          %v1137 = vadd.f32 %v1121, %v519
          %v1138 = vadd.f32 %v1122, %v519
          %v1139 = vadd.f32 %v1123, %v519
          %v1140 = vadd.f32 %v1124, %v519
          %v1141 = vadd.f32 %v1125, %v519
          %v1142 = vadd.f32 %v1126, %v519
          %v1143 = vadd.f32 %v1127, %v519
          %v1144 = vadd.f32 %v1128, %v519
          %v1145 = vadd.f32 %v1129, %v519
          %v1146 = vadd.f32 %v1130, %v519
          %v1147 = vadd.f32 %v1131, %v519
          %1148 = vst [vmem:[#allocation14] sm:$0xff] %v1132
          %1149 = vst [vmem:[#allocation14 + $0x8] sm:$0xff] %v1133
          %1150 = vst [vmem:[#allocation14 + $0x10] sm:$0xff] %v1134
          %1151 = vst [vmem:[#allocation14 + $0x18] sm:$0xff] %v1135
          %1152 = vst [vmem:[#allocation14 + $0x20] sm:$0xff] %v1136
          %1153 = vst [vmem:[#allocation14 + $0x28] sm:$0xff] %v1137
          %1154 = vst [vmem:[#allocation14 + $0x30] sm:$0xff] %v1138
          %1155 = vst [vmem:[#allocation14 + $0x38] sm:$0xff] %v1139
          %1156 = vst [vmem:[#allocation14 + $0x40] sm:$0xff] %v1140
          %1157 = vst [vmem:[#allocation14 + $0x48] sm:$0xff] %v1141
          %1158 = vst [vmem:[#allocation14 + $0x50] sm:$0xff] %v1142
          %1159 = vst [vmem:[#allocation14 + $0x58] sm:$0xff] %v1143
          %1160 = vst [vmem:[#allocation14 + $0x60] sm:$0xff] %v1144
          %1161 = vst [vmem:[#allocation14 + $0x68] sm:$0xff] %v1145
          %1162 = vst [vmem:[#allocation14 + $0x70] sm:$0xff] %v1146
          %1163 = vst [vmem:[#allocation14 + $0x78] sm:$0xff] %v1147
          %v1164 = vadd.s32 %v572, 16
          %v1165 = vadd.s32 %v572, 24
          %v1166 = vadd.s32 %v572, 32
          %v1167 = vadd.s32 %v572, 40
          %v1168 = vadd.s32 %v572, 48
          %v1169 = vadd.s32 %v572, 56
          %v1170 = vadd.s32 %v572, 64
          %v1171 = vadd.s32 %v572, 72
          %v1172 = vadd.s32 %v572, 80
          %v1173 = vadd.s32 %v572, 88
          %v1174 = vadd.s32 %v572, 96
          %v1175 = vadd.s32 %v572, 104
          %v1176 = vadd.s32 %v572, 112
          %v1177 = vadd.s32 %v572, 120
          %vm1178 = vcmp.eq.s32.totalorder %v572, %v527
          %vm1179 = vcmp.eq.s32.totalorder %v573, %v527
          %vm1180 = vcmp.eq.s32.totalorder %v1164, %v527
          %vm1181 = vcmp.eq.s32.totalorder %v1165, %v527
          %vm1182 = vcmp.eq.s32.totalorder %v1166, %v527
          %vm1183 = vcmp.eq.s32.totalorder %v1167, %v527
          %vm1184 = vcmp.eq.s32.totalorder %v1168, %v527
          %vm1185 = vcmp.eq.s32.totalorder %v1169, %v527
          %vm1186 = vcmp.eq.s32.totalorder %v1170, %v527
          %vm1187 = vcmp.eq.s32.totalorder %v1171, %v527
          %vm1188 = vcmp.eq.s32.totalorder %v1172, %v527
          %vm1189 = vcmp.eq.s32.totalorder %v1173, %v527
          %vm1190 = vcmp.eq.s32.totalorder %v1174, %v527
          %vm1191 = vcmp.eq.s32.totalorder %v1175, %v527
          %vm1192 = vcmp.eq.s32.totalorder %v1176, %v527
          %vm1193 = vcmp.eq.s32.totalorder %v1177, %v527
          %v1194 = vsel %vm1178, 1.0, -1.0
          %v1195 = vsel %vm1179, 1.0, -1.0
          %v1196 = vsel %vm1180, 1.0, -1.0
          %v1197 = vsel %vm1181, 1.0, -1.0
          %v1198 = vsel %vm1182, 1.0, -1.0
          %v1199 = vsel %vm1183, 1.0, -1.0
          %v1200 = vsel %vm1184, 1.0, -1.0
          %v1201 = vsel %vm1185, 1.0, -1.0
          %v1202 = vsel %vm1186, 1.0, -1.0
          %v1203 = vsel %vm1187, 1.0, -1.0
          %v1204 = vsel %vm1188, 1.0, -1.0
          %v1205 = vsel %vm1189, 1.0, -1.0
          %v1206 = vsel %vm1190, 1.0, -1.0
          %v1207 = vsel %vm1191, 1.0, -1.0
          %v1208 = vsel %vm1192, 1.0, -1.0
          %v1209 = vsel %vm1193, 1.0, -1.0
          %vm1210 = vcmp.lt.s32.totalorder %v572, 20
          %vm1211 = vcmp.lt.s32.totalorder %v573, 20
          %vm1212 = vcmp.lt.s32.totalorder %v1164, 20
          %vm1213 = vcmp.lt.s32.totalorder %v1165, 20
          %vm1214 = vcmp.lt.s32.totalorder %v1166, 20
          %vm1215 = vcmp.lt.s32.totalorder %v1167, 20
          %vm1216 = vcmp.lt.s32.totalorder %v1168, 20
          %vm1217 = vcmp.lt.s32.totalorder %v1169, 20
          %vm1218 = vcmp.lt.s32.totalorder %v1170, 20
          %vm1219 = vcmp.lt.s32.totalorder %v1171, 20
          %vm1220 = vcmp.lt.s32.totalorder %v1172, 20
          %vm1221 = vcmp.lt.s32.totalorder %v1173, 20
          %vm1222 = vcmp.lt.s32.totalorder %v1174, 20
          %vm1223 = vcmp.lt.s32.totalorder %v1175, 20
          %vm1224 = vcmp.lt.s32.totalorder %v1176, 20
          %vm1225 = vcmp.lt.s32.totalorder %v1177, 20
          %vm1226 = vcmp.lt.s32.totalorder %v527, 20
          %vm1227 = vmand %vm1210, %vm1226
          %vm1228 = vmand %vm1211, %vm1226
          %vm1229 = vmand %vm1212, %vm1226
          %vm1230 = vmand %vm1213, %vm1226
          %vm1231 = vmand %vm1214, %vm1226
          %vm1232 = vmand %vm1215, %vm1226
          %vm1233 = vmand %vm1216, %vm1226
          %vm1234 = vmand %vm1217, %vm1226
          %vm1235 = vmand %vm1218, %vm1226
          %vm1236 = vmand %vm1219, %vm1226
          %vm1237 = vmand %vm1220, %vm1226
          %vm1238 = vmand %vm1221, %vm1226
          %vm1239 = vmand %vm1222, %vm1226
          %vm1240 = vmand %vm1223, %vm1226
          %vm1241 = vmand %vm1224, %vm1226
          %vm1242 = vmand %vm1225, %vm1226
          %v1243 = vmul.f32 %v1194, %v1132
          %v1244 = vmul.f32 %v1195, %v1133
          %v1245 = vmul.f32 %v1196, %v1134
          %v1246 = vmul.f32 %v1197, %v1135
          %v1247 = vmul.f32 %v1198, %v1136
          %v1248 = vmul.f32 %v1199, %v1137
          %v1249 = vmul.f32 %v1200, %v1138
          %v1250 = vmul.f32 %v1201, %v1139
          %v1251 = vmul.f32 %v1202, %v1140
          %v1252 = vmul.f32 %v1203, %v1141
          %v1253 = vmul.f32 %v1204, %v1142
          %v1254 = vmul.f32 %v1205, %v1143
          %v1255 = vmul.f32 %v1206, %v1144
          %v1256 = vmul.f32 %v1207, %v1145
          %v1257 = vmul.f32 %v1208, %v1146
          %v1258 = vmul.f32 %v1209, %v1147
          %v1259 = vsub.f32 0.0, %v1243
          %v1260 = vsub.f32 0.0, %v1244
          %v1261 = vsub.f32 0.0, %v1245
          %v1262 = vsub.f32 0.0, %v1246
          %v1263 = vsub.f32 0.0, %v1247
          %v1264 = vsub.f32 0.0, %v1248
          %v1265 = vsub.f32 0.0, %v1249
          %v1266 = vsub.f32 0.0, %v1250
          %v1267 = vsub.f32 0.0, %v1251
          %v1268 = vsub.f32 0.0, %v1252
          %v1269 = vsub.f32 0.0, %v1253
          %v1270 = vsub.f32 0.0, %v1254
          %v1271 = vsub.f32 0.0, %v1255
          %v1272 = vsub.f32 0.0, %v1256
          %v1273 = vsub.f32 0.0, %v1257
          %v1274 = vsub.f32 0.0, %v1258
          %v1275 = vmax.f32 %v1259, 0.0
          %v1276 = vmax.f32 %v1260, 0.0
          %v1277 = vmax.f32 %v1261, 0.0
          %v1278 = vmax.f32 %v1262, 0.0
          %v1279 = vmax.f32 %v1263, 0.0
          %v1280 = vmax.f32 %v1264, 0.0
          %v1281 = vmax.f32 %v1265, 0.0
          %v1282 = vmax.f32 %v1266, 0.0
          %v1283 = vmax.f32 %v1267, 0.0
          %v1284 = vmax.f32 %v1268, 0.0
          %v1285 = vmax.f32 %v1269, 0.0
          %v1286 = vmax.f32 %v1270, 0.0
          %v1287 = vmax.f32 %v1271, 0.0
          %v1288 = vmax.f32 %v1272, 0.0
          %v1289 = vmax.f32 %v1273, 0.0
          %v1290 = vmax.f32 %v1274, 0.0
          %v1291 = vand.u32 2147483647, %v1259
          %v1292 = vand.u32 2147483647, %v1260
          %v1293 = vand.u32 2147483647, %v1261
          %v1294 = vand.u32 2147483647, %v1262
          %v1295 = vand.u32 2147483647, %v1263
          %v1296 = vand.u32 2147483647, %v1264
          %v1297 = vand.u32 2147483647, %v1265
          %v1298 = vand.u32 2147483647, %v1266
          %v1299 = vand.u32 2147483647, %v1267
          %v1300 = vand.u32 2147483647, %v1268
          %v1301 = vand.u32 2147483647, %v1269
          %v1302 = vand.u32 2147483647, %v1270
          %v1303 = vand.u32 2147483647, %v1271
          %v1304 = vand.u32 2147483647, %v1272
          %v1305 = vand.u32 2147483647, %v1273
          %v1306 = vand.u32 2147483647, %v1274
          %v1307 = vsub.f32 0.0, %v1291
          %v1308 = vsub.f32 0.0, %v1292
          %v1309 = vsub.f32 0.0, %v1293
          %v1310 = vsub.f32 0.0, %v1294
          %v1311 = vsub.f32 0.0, %v1295
          %v1312 = vsub.f32 0.0, %v1296
          %v1313 = vsub.f32 0.0, %v1297
          %v1314 = vsub.f32 0.0, %v1298
          %v1315 = vsub.f32 0.0, %v1299
          %v1316 = vsub.f32 0.0, %v1300
          %v1317 = vsub.f32 0.0, %v1301
          %v1318 = vsub.f32 0.0, %v1302
          %v1319 = vsub.f32 0.0, %v1303
          %v1320 = vsub.f32 0.0, %v1304
          %v1321 = vsub.f32 0.0, %v1305
          %v1322 = vsub.f32 0.0, %v1306
          %v1323 = vmul.f32 %v1307, 1.442695
          %v1324 = vpow.pop %v1323
          %v1325 = vmul.f32 %v1308, 1.442695
          %v1326 = vpow.pop %v1325
          %v1327 = vmul.f32 %v1309, 1.442695
          %v1328 = vpow.pop %v1327
          %v1329 = vmul.f32 %v1310, 1.442695
          %v1330 = vpow.pop %v1329
          %v1331 = vmul.f32 %v1311, 1.442695
          %v1332 = vpow.pop %v1331
          %v1333 = vmul.f32 %v1312, 1.442695
          %v1334 = vpow.pop %v1333
          %v1335 = vmul.f32 %v1313, 1.442695
          %v1336 = vpow.pop %v1335
          %v1337 = vmul.f32 %v1314, 1.442695
          %v1338 = vpow.pop %v1337
          %v1339 = vmul.f32 %v1315, 1.442695
          %v1340 = vpow.pop %v1339
          %v1341 = vmul.f32 %v1316, 1.442695
          %v1342 = vpow.pop %v1341
          %v1343 = vmul.f32 %v1317, 1.442695
          %v1344 = vpow.pop %v1343
          %v1345 = vmul.f32 %v1318, 1.442695
          %v1346 = vpow.pop %v1345
          %v1347 = vmul.f32 %v1319, 1.442695
          %v1348 = vpow.pop %v1347
          %v1349 = vmul.f32 %v1320, 1.442695
          %v1350 = vpow.pop %v1349
          %v1351 = vmul.f32 %v1321, 1.442695
          %v1352 = vpow.pop %v1351
          %v1353 = vmul.f32 %v1322, 1.442695
          %v1354 = vpow.pop %v1353
          %v1355 = vadd.f32 %v1324, 1.0
          %v1356 = vadd.f32 %v1326, 1.0
          %v1357 = vadd.f32 %v1328, 1.0
          %v1358 = vadd.f32 %v1330, 1.0
          %v1359 = vadd.f32 %v1332, 1.0
          %v1360 = vadd.f32 %v1334, 1.0
          %v1361 = vadd.f32 %v1336, 1.0
          %v1362 = vadd.f32 %v1338, 1.0
          %v1363 = vadd.f32 %v1340, 1.0
          %v1364 = vadd.f32 %v1342, 1.0
          %v1365 = vadd.f32 %v1344, 1.0
          %v1366 = vadd.f32 %v1346, 1.0
          %v1367 = vadd.f32 %v1348, 1.0
          %v1368 = vadd.f32 %v1350, 1.0
          %v1369 = vadd.f32 %v1352, 1.0
          %v1370 = vadd.f32 %v1354, 1.0
          %v1371 = vlog2.pop %v1355
          %v1372 = vmul.f32 %v1371, 0.6931472
          %v1373 = vlog2.pop %v1356
          %v1374 = vmul.f32 %v1373, 0.6931472
          %v1375 = vlog2.pop %v1357
          %v1376 = vmul.f32 %v1375, 0.6931472
          %v1377 = vlog2.pop %v1358
          %v1378 = vmul.f32 %v1377, 0.6931472
          %v1379 = vlog2.pop %v1359
          %v1380 = vmul.f32 %v1379, 0.6931472
          %v1381 = vlog2.pop %v1360
          %v1382 = vmul.f32 %v1381, 0.6931472
          %v1383 = vlog2.pop %v1361
          %v1384 = vmul.f32 %v1383, 0.6931472
          %v1385 = vlog2.pop %v1362
          %v1386 = vmul.f32 %v1385, 0.6931472
          %v1387 = vlog2.pop %v1363
          %v1388 = vmul.f32 %v1387, 0.6931472
          %v1389 = vlog2.pop %v1364
          %v1390 = vmul.f32 %v1389, 0.6931472
          %v1391 = vlog2.pop %v1365
          %v1392 = vmul.f32 %v1391, 0.6931472
          %v1393 = vlog2.pop %v1366
          %v1394 = vmul.f32 %v1393, 0.6931472
          %v1395 = vlog2.pop %v1367
          %v1396 = vmul.f32 %v1395, 0.6931472
          %v1397 = vlog2.pop %v1368
          %v1398 = vmul.f32 %v1397, 0.6931472
          %v1399 = vlog2.pop %v1369
          %v1400 = vmul.f32 %v1399, 0.6931472
          %v1401 = vlog2.pop %v1370
          %v1402 = vmul.f32 %v1401, 0.6931472
          %v1403 = vadd.f32 %v1275, %v1372
          %v1404 = vadd.f32 %v1276, %v1374
          %v1405 = vadd.f32 %v1277, %v1376
          %v1406 = vadd.f32 %v1278, %v1378
          %v1407 = vadd.f32 %v1279, %v1380
          %v1408 = vadd.f32 %v1280, %v1382
          %v1409 = vadd.f32 %v1281, %v1384
          %v1410 = vadd.f32 %v1282, %v1386
          %v1411 = vadd.f32 %v1283, %v1388
          %v1412 = vadd.f32 %v1284, %v1390
          %v1413 = vadd.f32 %v1285, %v1392
          %v1414 = vadd.f32 %v1286, %v1394
          %v1415 = vadd.f32 %v1287, %v1396
          %v1416 = vadd.f32 %v1288, %v1398
          %v1417 = vadd.f32 %v1289, %v1400
          %v1418 = vadd.f32 %v1290, %v1402
          %v1419 = vsel %vm1227, %v1403, 0.0
          %v1420 = vsel %vm1228, %v1404, 0.0
          %v1421 = vsel %vm1229, %v1405, 0.0
          %v1422 = vsel %vm1230, %v1406, 0.0
          %v1423 = vsel %vm1231, %v1407, 0.0
          %v1424 = vsel %vm1232, %v1408, 0.0
          %v1425 = vsel %vm1233, %v1409, 0.0
          %v1426 = vsel %vm1234, %v1410, 0.0
          %v1427 = vsel %vm1235, %v1411, 0.0
          %v1428 = vsel %vm1236, %v1412, 0.0
          %v1429 = vsel %vm1237, %v1413, 0.0
          %v1430 = vsel %vm1238, %v1414, 0.0
          %v1431 = vsel %vm1239, %v1415, 0.0
          %v1432 = vsel %vm1240, %v1416, 0.0
          %v1433 = vsel %vm1241, %v1417, 0.0
          %v1434 = vsel %vm1242, %v1418, 0.0
          %v1435 = vadd.f32 %v1419, %v1420
          %v1436 = vadd.f32 %v1435, %v1421
          %v1437 = vadd.f32 %v1436, %v1422
          %v1438 = vadd.f32 %v1437, %v1423
          %v1439 = vadd.f32 %v1438, %v1424
          %v1440 = vadd.f32 %v1439, %v1425
          %v1441 = vadd.f32 %v1440, %v1426
          %v1442 = vadd.f32 %v1441, %v1427
          %v1443 = vadd.f32 %v1442, %v1428
          %v1444 = vadd.f32 %v1443, %v1429
          %v1445 = vadd.f32 %v1444, %v1430
          %v1446 = vadd.f32 %v1445, %v1431
          %v1447 = vadd.f32 %v1446, %v1432
          %v1448 = vadd.f32 %v1447, %v1433
          %v1449 = vadd.f32 %v1448, %v1434
          %1450 = vadd.xlane.f32.xlu0 %v1449
          %v1451 = vpop.xlane.xlu0 %1450
          %v1452 = vrot.slane %v1451, 4
          %v1453 = vadd.f32 %v1451, %v1452
          %v1454 = vrot.slane %v1453, 2
          %v1455 = vadd.f32 %v1453, %v1454
          %v1456 = vrot.slane %v1455, 1
          %v1457 = vadd.f32 %v1455, %v1456
          %s1458 = vtos %v1457
          %v1459 = vstv %s1458
          %v1460 = vmul.f32 %v1459, 0.05
          %vm1461 = vcmask 0
          %1462 = vst.msk [vmem:[#allocation16] sm:$0x1] %vm1461, %v1460
        $region52: #{tpu_custom_call.1} parent=35 // pred_fallthru
          _
        %s1463 = sand.u32 %s131, 1
        %s1464 = scalar_lea.sflag [#allocation7], %s1463
        %s1465 = sand.u32 %s131, 1
        %s1466 = smul.addr %s1465, 16
        %s1467 = scalar_lea.vmem [#allocation10], %s1466
        %s1468 = sand.u32 %s29, 1
        %s1469 = scalar_lea.sflag [#allocation12], %s1468
        %s1470 = sand.u32 %s157, 1
        %s1471 = smul.addr %s1470, 16
        %s1472 = scalar_lea.vmem [#allocation11], %s1471
        // Predicated region
        $region53: #{tpu_custom_call.1} parent=35 // pred_check
          %p1473 = pneg %p141
        $region54: #{tpu_custom_call.1} parent=35 // pred_check_branch
          %1475 = sbr.rel (%p1473) target = $region56
        $region55: #{tpu_custom_call.1} parent=35 // pred_region
          %s1476 = smul.u32 2, %s29
          %s1478 = ssub.s32 256, 256
          %1479 = vsyncadd %s1464, %s1478
          %s1480 = smul.addr %s1476, 128
          %s1481 = scalar_lea.hbm %s4, %s1480
          %s1482 = sshll.u32 %s1467, 4
          %s1483 = int_to_ptr.vmem [resolvable:$true] %s1482
          %1488 = dma.vmem_to_hbm [thread:$0]  %s1483, 256, %s1481, %s1464, 128, 128, 8
        $region56: #{tpu_custom_call.1} parent=35 // pred_fallthru
          _
        // Predicated region
        $region57: #{tpu_custom_call.1} parent=35 // pred_check
          %p1489 = pneg %p167
        $region58: #{tpu_custom_call.1} parent=35 // pred_check_branch
          %1491 = sbr.rel (%p1489) target = $region60
        $region59: #{tpu_custom_call.1} parent=35 // pred_region
          %s1492 = smul.u32 2, %s29
          %s1494 = ssub.s32 256, 256
          %1495 = vsyncadd %s1469, %s1494
          %s1496 = smul.addr %s1492, 128
          %s1497 = scalar_lea.hbm %s5, %s1496
          %s1498 = sshll.u32 %s1472, 4
          %s1499 = int_to_ptr.vmem [resolvable:$true] %s1498
          %1504 = dma.vmem_to_hbm [thread:$0]  %s1499, 256, %s1497, %s1469, 128, 128, 8
        $region60: #{tpu_custom_call.1} parent=35 // pred_fallthru
          _
        // Predicated region
        $region61: #{tpu_custom_call.1} parent=35 // pred_check
          %p1505 = pneg %p188
        $region62: #{tpu_custom_call.1} parent=35 // pred_check_branch
          %1507 = sbr.rel (%p1505) target = $region64
        $region63: #{tpu_custom_call.1} parent=35 // pred_region
          %s1509 = ssub.s32 16, 16
          %1510 = vsyncadd [#allocation12], %s1509
          %s1512 = sshll.u32 [#allocation13], 4
          %s1513 = int_to_ptr.vmem [resolvable:$true] %s1512
          %1515 = dma.vmem_to_hbm [thread:$0]  %s1513, 16, %s6, [#allocation12]
        $region64: #{tpu_custom_call.1} parent=35 // pred_fallthru
          _
        // Predicated region
        $region65: #{tpu_custom_call.1} parent=35 // pred_check
          %p1516 = pneg %p209
        $region66: #{tpu_custom_call.1} parent=35 // pred_check_branch
          %1518 = sbr.rel (%p1516) target = $region68
        $region67: #{tpu_custom_call.1} parent=35 // pred_region
          %s1520 = ssub.s32 2048, 2048
          %1521 = vsyncadd [#allocation15], %s1520
          %s1522 = sshll.u32 [#allocation14], 4
          %s1523 = int_to_ptr.vmem [resolvable:$true] %s1522
          %1528 = dma.vmem_to_hbm [thread:$0]  %s1523, 2048, %s7, [#allocation15], 128, 128, 8
        $region68: #{tpu_custom_call.1} parent=35 // pred_fallthru
          _
        // Predicated region
        $region69: #{tpu_custom_call.1} parent=35 // pred_check
          %p1529 = pneg %p230
        $region70: #{tpu_custom_call.1} parent=35 // pred_check_branch
          %1531 = sbr.rel (%p1529) target = $region72
        $region71: #{tpu_custom_call.1} parent=35 // pred_region
          %s1533 = ssub.s32 16, 16
          %1534 = vsyncadd [#allocation15], %s1533
          %s1536 = sshll.u32 [#allocation16], 4
          %s1537 = int_to_ptr.vmem [resolvable:$true] %s1536
          %1539 = dma.vmem_to_hbm [thread:$0]  %s1537, 16, %s8, [#allocation15]
        $region72: #{tpu_custom_call.1} parent=35 // pred_fallthru
          _
        // Predicated region
        $region73: #{tpu_custom_call.1} parent=35 // pred_check
          %p1540 = pneg %p188
        $region74: #{tpu_custom_call.1} parent=35 // pred_check_branch
          %1542 = sbr.rel (%p1540) target = $region76
        $region75: #{tpu_custom_call.1} parent=35 // pred_region
          %1543 = dma.done [#allocation12], 16
        $region76: #{tpu_custom_call.1} parent=35 // pred_fallthru
          _
        // Predicated region
        $region77: #{tpu_custom_call.1} parent=35 // pred_check
          %p1544 = pneg %p209
        $region78: #{tpu_custom_call.1} parent=35 // pred_check_branch
          %1546 = sbr.rel (%p1544) target = $region80
        $region79: #{tpu_custom_call.1} parent=35 // pred_region
          %1547 = dma.done [#allocation15], 2048
        $region80: #{tpu_custom_call.1} parent=35 // pred_fallthru
          _
        // Predicated region
        $region81: #{tpu_custom_call.1} parent=35 // pred_check
          %p1548 = pneg %p230
        $region82: #{tpu_custom_call.1} parent=35 // pred_check_branch
          %1550 = sbr.rel (%p1548) target = $region84
        $region83: #{tpu_custom_call.1} parent=35 // pred_region
          %1551 = dma.done [#allocation15], 16
        $region84: #{tpu_custom_call.1} parent=35 // pred_fallthru
          _
      $region36: #{tpu_custom_call.1} parent=5 // pred_fallthru
        _
      %p1552 = scmp.le.s32.totalorder 2, %s24
      // Predicated region
      $region85: #{tpu_custom_call.1} parent=5 // pred_check
        %p1553 = pneg %p1552
      $region86: #{tpu_custom_call.1} parent=5 // pred_check_branch
        %1555 = sbr.rel (%p1553) target = $region88
      $region87: #{tpu_custom_call.1} parent=5 // pred_region
        %s1556 = ssub.s32 %s24, 2
        // Predicated region
        $region89: #{tpu_custom_call.1} parent=87 // pred_check
          %p1557 = pneg %p147
        $region90: #{tpu_custom_call.1} parent=87 // pred_check_branch
          %1559 = sbr.rel (%p1557) target = $region92
        $region91: #{tpu_custom_call.1} parent=87 // pred_region
          %s1560 = sand.u32 %s132, 1
          %s1561 = scalar_lea.sflag [#allocation7], %s1560
          %s1562 = sand.u32 %s132, 1
          %s1563 = smul.addr %s1562, 16
          %s1564 = scalar_lea.vmem [#allocation10], %s1563
          %1565 = dma.done %s1561, 256
        $region92: #{tpu_custom_call.1} parent=87 // pred_fallthru
          _
        // Predicated region
        $region93: #{tpu_custom_call.1} parent=87 // pred_check
          %p1566 = pneg %p173
        $region94: #{tpu_custom_call.1} parent=87 // pred_check_branch
          %1568 = sbr.rel (%p1566) target = $region96
        $region95: #{tpu_custom_call.1} parent=87 // pred_region
          %s1569 = sand.u32 %s30, 1
          %s1570 = scalar_lea.sflag [#allocation12], %s1569
          %s1571 = sand.u32 %s158, 1
          %s1572 = smul.addr %s1571, 16
          %s1573 = scalar_lea.vmem [#allocation11], %s1572
          %1574 = dma.done %s1570, 256
        $region96: #{tpu_custom_call.1} parent=87 // pred_fallthru
          _
      $region88: #{tpu_custom_call.1} parent=5 // pred_fallthru
        _
    $region6: #{tpu_custom_call.1} parent=1 // loop_footer
      %s28 = sadd.s32 1, %s24
    $region7: #{tpu_custom_call.1} parent=1 // loop_footer_branch
      %23 = sbr.rel target = $region3
    $region8: #{tpu_custom_call.1} parent=1 // loop_exit
      _
    %1575 = vsyncpa [#allocation6], 1
    %s1576 = scalar_lea.sflag [#allocation6], 1
    %1577 = vsyncpa %s1576, 1
    %1578 = vsyncpa [#allocation7], 1
    %s1579 = scalar_lea.sflag [#allocation7], 1
    %1580 = vsyncpa %s1579, 1
    %1581 = vsyncpa [#allocation12], 1
    %s1582 = scalar_lea.sflag [#allocation12], 1
    %1583 = vsyncpa %s1582, 1
    %1584 = vsyncpa [#allocation15], 1
    %1585 = vsyncpa [#allocation8], 1
    %s1586 = scalar_lea.sflag [#allocation8], 1
    %1587 = vsyncpa %s1586, 1

</llo_original>
